<compile_context>
chip_gen: v6e
topology: v6e:2x2x1
jax: 0.10.0
libtpu: 0.0.40
codegen_flags: <defaults>
</compile_context>

<pallas_src>
import jax
import jax.numpy as jnp
import numpy as np
from jax import lax
from jax.experimental import pallas as pl
from jax.experimental.pallas import tpu as pltpu


def _ceil_to(x, m):
    return ((x + m - 1) // m) * m


# ----------------------------- Pallas kernel ------------------------------ #
def gru_chunk_kernel(gx_ref, whh_ref, bn_ref, out_ref, h_scr):
    """One grid step = T_CHUNK GRU timesteps of one (direction, batch-block).

    grid = (D, batch_blocks, S // T_CHUNK); time reversal for the backward
    direction is handled by the chunk-level index_map plus a reversed
    within-chunk index, so the body is direction-agnostic.

    gx_ref : (T, bb, 3Hp) bf16  precomputed x@Wih + bih (+ bhh_r, bhh_z)
    whh_ref: (Hp, 3Hp)    bf16  recurrent weights, gates (r|z|n) on lanes
    bn_ref : (1, Hp)      f32   hidden bias of the n gate (kept separate)
    out_ref: (T, bb, Hp)  f32   per-step hidden state (original time order)
    h_scr  : (bb, Hp)     f32   VMEM-resident recurrent state
    """
    d = pl.program_id(0)          # direction
    c = pl.program_id(2)          # time chunk (innermost grid axis)

    @pl.when(c == 0)
    def _():
        h_scr[...] = jnp.zeros_like(h_scr)        # torch.zeros init hidden

    tc = out_ref.shape[0]
    bb, hp = h_scr.shape

    # loop-invariant: recurrent weights and hoisted n-gate bias broadcast
    w = whh_ref[...]                                          # (Hp, 3Hp) bf16
    bn = jnp.broadcast_to(bn_ref[...], (bb, hp))              # (bb, Hp) f32

    base = d * (tc - 1)           # 0 for forward, tc-1 for backward
    sign = 1 - 2 * d              # +1 for forward, -1 for backward

    def step(i, h):
        tt = base + sign * i                                  # in-chunk index
        gx = gx_ref[tt].astype(jnp.float32)                   # (bb, 3Hp)
        # single fused recurrent matmul: bf16 x bf16 -> f32 accumulate (MXU)
        gh = jnp.dot(h.astype(jnp.bfloat16), w,
                     preferred_element_type=jnp.float32)      # (bb, 3Hp)
        # gate slices are lane-aligned (each gate padded to Hp = mult. of 128)
        r = jax.nn.sigmoid(gx[:, :hp] + gh[:, :hp])
        z = jax.nn.sigmoid(gx[:, hp:2 * hp] + gh[:, hp:2 * hp])
        n = jnp.tanh(gx[:, 2 * hp:] + r * (gh[:, 2 * hp:] + bn))
        h_new = (1.0 - z) * n + z * h
        out_ref[tt] = h_new
        return h_new

    h_final = lax.fori_loop(0, tc, step, h_scr[...],
                            unroll=True if tc <= 8 else False)
    h_scr[...] = h_final


def bigru_pallas(gx, whh_bf16, bn, t_chunk, nb):
    """gx: (D, S, Bp, 3Hp) bf16, whh: (D, Hp, 3Hp) bf16, bn: (D, 1, Hp) f32.

    Returns per-step hidden states (D, S, Bp, Hp) f32 in ORIGINAL time order
    (backward-direction outputs land in their original slot via the index_map
    + reversed in-chunk index, so no [::-1] pass is needed in the wrapper)."""
    D, S, Bp, G = gx.shape
    Hp = G // 3
    nc = S // t_chunk
    bb = Bp // nb

    def t_idx(d, c):
        # chunk-level time reversal: d==0 -> c;  d==1 -> nc-1-c
        return d * (nc - 1) + (1 - 2 * d) * c

    # explicit VMEM budget (double-buffered chunks), kept well under v7x 64MiB
    vmem_bytes = (
        2 * t_chunk * bb * 3 * Hp * 2      # gx chunk (bf16), double-buffered
        + 2 * t_chunk * bb * Hp * 4        # out chunk (f32), double-buffered
        + 2 * Hp * 3 * Hp * 2              # whh block (bf16)
        + 2 * Hp * 4                       # bn block
        + bb * Hp * 4                      # h scratch
    )
    vmem_limit = int(min(max(2 * vmem_bytes, 16 << 20), 60 << 20))

    return pl.pallas_call(
        gru_chunk_kernel,
        out_shape=jax.ShapeDtypeStruct((D, S, Bp, Hp), jnp.float32),
        grid_spec=pltpu.PrefetchScalarGridSpec(
            num_scalar_prefetch=0,
            grid=(D, nb, nc),
            in_specs=[
                pl.BlockSpec((None, t_chunk, bb, 3 * Hp),
                             lambda d, b, c: (d, t_idx(d, c), b, 0)),
                pl.BlockSpec((None, Hp, 3 * Hp), lambda d, b, c: (d, 0, 0)),
                pl.BlockSpec((None, 1, Hp), lambda d, b, c: (d, 0, 0)),
            ],
            out_specs=pl.BlockSpec((None, t_chunk, bb, Hp),
                                   lambda d, b, c: (d, t_idx(d, c), b, 0)),
            scratch_shapes=[pltpu.VMEM((bb, Hp), jnp.float32)],
        ),
        compiler_params=pltpu.CompilerParams(
            # direction & batch-block axes are independent (map to the 2 TCs
            # on v7x); the time-chunk axis carries the true recurrence.
            dimension_semantics=("parallel", "parallel", "arbitrary"),
            vmem_limit_bytes=vmem_limit),
    )(gx, whh_bf16, bn)


# ------------------------------- wrapper ----------------------------------- #
def _pad_gate_axis(w, H, Hp):
    """(..., 3H) -> (..., 3Hp): each gate block padded to Hp lanes."""
    parts = []
    for g in range(3):
        wg = w[..., g * H:(g + 1) * H]
        pad = [(0, 0)] * (w.ndim - 1) + [(0, Hp - H)]
        parts.append(jnp.pad(wg, pad))
    return jnp.concatenate(parts, axis=-1)


def title_encoder_forward(title, params, bidirectional):
    """Mirror TitleEncoder.forward.

    title: (B, S) int32 token ids
    returns (outputs, hidden):
      outputs: (S, B, num_dir * H)
      hidden : (1, B, H)   (torch adds the two directions when bidirectional)
    """
    B, S = title.shape
    H = params["whh"].shape[1]
    D = 2 if bidirectional else 1
    Hp = _ceil_to(H, 128)   # lane-dense gates / outputs
    Bp = _ceil_to(B, 8)     # sublane-aligned batch

    # batch blocking: lets the D=1 path still use both TCs on v7x
    nb = 2 if (D == 1 and Bp % 16 == 0) else 1
    bb = Bp // nb

    # time chunk: largest divisor of S whose double-buffered in+out chunks
    # stay within ~8 MiB of VMEM (v7x-safe).
    # TODO(synk): pad+mask the time axis so non-divisor S can still use large
    # chunks (padding would contaminate the backward recurrence today).
    bytes_per_step = 2 * (bb * 3 * Hp * 2 + bb * Hp * 4)
    t_cap = max(1, min(64, (8 << 20) // max(bytes_per_step, 1)))
    t_chunk = 1
    for cand in range(min(S, t_cap), 0, -1):
        if S % cand == 0:
            t_chunk = cand
            break

    wih = params["wih"][:D]
    whh = params["whh"][:D]
    bih = params["bih"][:D]
    bhh = params["bhh"][:D]

    # pad each gate block so it sits at a lane-aligned offset g*Hp
    wih_p = _pad_gate_axis(wih, H, Hp)                         # (D, E, 3Hp)
    whh_p = _pad_gate_axis(whh, H, Hp)                         # (D, H, 3Hp)
    whh_p = jnp.pad(whh_p, ((0, 0), (0, Hp - H), (0, 0)))      # (D, Hp, 3Hp)
    bih_p = _pad_gate_axis(bih, H, Hp)                         # (D, 3Hp)
    bhh_p = _pad_gate_axis(bhh, H, Hp)                         # (D, 3Hp)

    # fold the r/z hidden biases into the input-side gates; the n-gate hidden
    # bias must stay separate because it is multiplied by r inside the cell.
    b_in = jnp.concatenate(
        [bih_p[:, :2 * Hp] + bhh_p[:, :2 * Hp], bih_p[:, 2 * Hp:]], axis=-1)
    bn = bhh_p[:, 2 * Hp:].reshape(D, 1, Hp)

    # Embedding lookup + hoisted input projection: one big MXU-shaped matmul
    # in XLA (bf16 inputs, f32 accumulate) instead of 3*S tiny matmuls inside
    # the serial recurrence.  gx is stored as bf16 to halve the per-step HBM
    # stream feeding the kernel.
    # TODO(synk): scalar-prefetch token ids and gather embedding rows
    # in-kernel instead of materializing emb in HBM (matters when B*S*E is
    # comparable to the gx footprint).
    emb = jnp.take(params["embedding"], title, axis=0).astype(jnp.bfloat16)
    gx = jnp.einsum("bse,deg->dsbg", emb, wih_p.astype(jnp.bfloat16),
                    preferred_element_type=jnp.float32)        # (D, S, B, 3Hp)
    gx = gx + b_in[:, None, None, :]
    gx = jnp.pad(gx, ((0, 0), (0, 0), (0, Bp - B), (0, 0)))    # batch -> Bp
    gx = gx.astype(jnp.bfloat16)

    out = bigru_pallas(gx, whh_p.astype(jnp.bfloat16), bn,
                       t_chunk, nb)                            # (D, S, Bp, Hp)

    out_f = out[0, :, :B, :H]                                  # (S, B, H)
    if not bidirectional:
        hidden = out_f[S - 1][None]                            # (1, B, H)
        return out_f, hidden

    out_b = out[1, :, :B, :H]                                  # (S, B, H)
    outputs = jnp.concatenate([out_f, out_b], axis=-1)         # (S, B, 2H)
    # the backward direction's final hidden is its output at original time 0
    hidden = (out_f[S - 1] + out_b[0])[None]                   # (1, B, H)
    return outputs, hidden


# --------------------------- pure-JAX reference ----------------------------- #
def _gru_ref(x_seq, wih, whh, bih, bhh):
    H = whh.shape[0]
    B = x_seq.shape[1]
    h0 = jnp.zeros((B, H), jnp.float32)

    def step(h, x):
        gi = x @ wih + bih
        gh = h @ whh + bhh
        r = jax.nn.sigmoid(gi[:, :H] + gh[:, :H])
        z = jax.nn.sigmoid(gi[:, H:2 * H] + gh[:, H:2 * H])
        n = jnp.tanh(gi[:, 2 * H:] + r * gh[:, 2 * H:])
        h_new = (1.0 - z) * n + z * h
        return h_new, h_new

    hT, outs = lax.scan(step, h0, x_seq)
    return outs, hT[None]


def title_encoder_ref(title, params, bidirectional):
    emb = jnp.take(params["embedding"], title, axis=0).astype(jnp.float32)
    x_seq = jnp.transpose(emb, (1, 0, 2))
    out_f, h_f = _gru_ref(x_seq, params["wih"][0], params["whh"][0],
                          params["bih"][0], params["bhh"][0])
    if not bidirectional:
        return out_f, h_f
    out_b, h_b = _gru_ref(x_seq[::-1], params["wih"][1], params["whh"][1],
                          params["bih"][1], params["bhh"][1])
    out_b = out_b[::-1]
    return jnp.concatenate([out_f, out_b], axis=-1), h_f + h_b


# --------------------------------- main ------------------------------------ #
def make_params(key, vocab_size, embedding_dim, hidden_dim):
    """Deterministic synthetic parameters (PyTorch-style uniform init).

    Fused gate layout: gate order (r, z, n) along the last axis so the kernel
    does a single x@W / h@W per direction.  Two directions are always created;
    the unidirectional path simply uses direction 0."""
    ks = jax.random.split(key, 5)
    bound = 1.0 / np.sqrt(hidden_dim)

    def u(k, shape):
        return jax.random.uniform(k, shape, jnp.float32, -bound, bound)

    return {
        "embedding": jax.random.normal(ks[0], (vocab_size, embedding_dim),
                                       jnp.float32),
        "wih": u(ks[1], (2, embedding_dim, 3 * hidden_dim)),
        "whh": u(ks[2], (2, hidden_dim, 3 * hidden_dim)),
        "bih": u(ks[3], (2, 3 * hidden_dim)),
        "bhh": u(ks[4], (2, 3 * hidden_dim)),
    }


if __name__ == "__main__":
    batch, seq_len = 2, 8
    vocab_size, embedding_dim, hidden_dim = 50, 16, 32

    key = jax.random.PRNGKey(0)
    k_title, k_params = jax.random.split(key)
    title = jax.random.randint(k_title, (batch, seq_len), 0, vocab_size,
                               dtype=jnp.int32)
    params = make_params(k_params, vocab_size, embedding_dim, hidden_dim)

    fwd = jax.jit(title_encoder_forward, static_argnums=2)

    # ---- bidirectional (the reference configuration) ----
    outputs, hidden = fwd(title, params, True)
    outputs = jax.block_until_ready(outputs)
    hidden = jax.block_until_ready(hidden)
    assert outputs.shape == (seq_len, batch, 2 * hidden_dim)
    assert hidden.shape == (1, batch, hidden_dim)

    out_ref, hid_ref = title_encoder_ref(title, params, True)
    np.testing.assert_allclose(np.asarray(outputs), np.asarray(out_ref),
                               atol=2e-2, rtol=2e-2)
    np.testing.assert_allclose(np.asarray(hidden), np.asarray(hid_ref),
                               atol=2e-2, rtol=2e-2)

    # ---- unidirectional path (same kernel, D = 1) ----
    out_u, hid_u = fwd(title, params, False)
    out_u = jax.block_until_ready(out_u)
    hid_u = jax.block_until_ready(hid_u)
    assert out_u.shape == (seq_len, batch, hidden_dim)
    assert hid_u.shape == (1, batch, hidden_dim)
    out_ur, hid_ur = title_encoder_ref(title, params, False)
    np.testing.assert_allclose(np.asarray(out_u), np.asarray(out_ur),
                               atol=2e-2, rtol=2e-2)
    np.testing.assert_allclose(np.asarray(hid_u), np.asarray(hid_ur),
                               atol=2e-2, rtol=2e-2)

    print("KERNEL_OK")
</pallas_src>

<mosaic_0001>
module attributes {stable_mosaic.version = 11 : i64} {
  func.func @gru_chunk_kernel(%arg0: i32, %arg1: i32, %arg2: i32, %arg3: memref<1x8x8x384xbf16, #tpu.memory_space<vmem>>, %arg4: memref<1x128x384xbf16, #tpu.memory_space<vmem>>, %arg5: memref<1x1x128xf32, #tpu.memory_space<vmem>>, %arg6: memref<1x8x8x128xf32, #tpu.memory_space<vmem>>, %arg7: memref<8x128xf32, #tpu.memory_space<vmem>>) attributes {dimension_semantics = [#tpu.dimension_semantics<parallel>, #tpu.dimension_semantics<parallel>, #tpu.dimension_semantics<arbitrary>], iteration_bounds = array<i64: 2, 1, 1>, scalar_prefetch = 0 : i64, scratch_operands = 1 : i64, tpu.core_type = #tpu.core_type<tc>, window_params = [{transform_indices = @transform_0, window_bounds = array<i64: 1, 8, 8, 384>}, {transform_indices = @transform_1, window_bounds = array<i64: 1, 128, 384>}, {transform_indices = @transform_2, window_bounds = array<i64: 1, 1, 128>}, {transform_indices = @transform_3, window_bounds = array<i64: 1, 8, 8, 128>}]} {
    %c0_i32 = arith.constant 0 : i32
    %0 = arith.cmpi eq, %arg2, %c0_i32 : i32
    %1 = arith.extui %0 : i1 to i32
    %c0_i32_0 = arith.constant 0 : i32
    %2 = arith.cmpi ne, %1, %c0_i32_0 : i32
    scf.if %2 {
      %cst_93 = arith.constant 0.000000e+00 : f32
      %326 = vector.broadcast %cst_93 : f32 to vector<8x128xf32>
      %c0_94 = arith.constant 0 : index
      %c0_95 = arith.constant 0 : index
      %327 = vector.load %arg7[%c0_94, %c0_95] : memref<8x128xf32, #tpu.memory_space<vmem>>, vector<8x128xf32>
      tpu.vector_store %arg7[%c0_94, %c0_95], %326 {strides = array<i32>} : memref<8x128xf32, #tpu.memory_space<vmem>>, vector<8x128xf32>,
    } else {
    }
    %c0 = arith.constant 0 : index
    %c0_1 = arith.constant 0 : index
    %c0_2 = arith.constant 0 : index
    %3 = vector.load %arg4[%c0, %c0_1, %c0_2] : memref<1x128x384xbf16, #tpu.memory_space<vmem>>, vector<1x128x384xbf16>
    %4 = vector.shape_cast %3 : vector<1x128x384xbf16> to vector<128x384xbf16>
    %c0_3 = arith.constant 0 : index
    %c0_4 = arith.constant 0 : index
    %c0_5 = arith.constant 0 : index
    %5 = vector.load %arg5[%c0_3, %c0_4, %c0_5] : memref<1x1x128xf32, #tpu.memory_space<vmem>>, vector<1x1x128xf32>
    %6 = vector.shape_cast %5 : vector<1x1x128xf32> to vector<1x128xf32>
    %7 = vector.shape_cast %6 : vector<1x128xf32> to vector<1x128xf32>
    %8 = vector.broadcast %7 : vector<1x128xf32> to vector<8x128xf32>
    %c7_i32 = arith.constant 7 : i32
    %9 = arith.muli %arg0, %c7_i32 : i32
    %c2_i32 = arith.constant 2 : i32
    %10 = arith.muli %c2_i32, %arg0 : i32
    %c1_i32 = arith.constant 1 : i32
    %11 = arith.subi %c1_i32, %10 : i32
    %c0_6 = arith.constant 0 : index
    %c0_7 = arith.constant 0 : index
    %12 = vector.load %arg7[%c0_6, %c0_7] : memref<8x128xf32, #tpu.memory_space<vmem>>, vector<8x128xf32>
    %c0_i32_8 = arith.constant 0 : i32
    %13 = arith.muli %11, %c0_i32_8 : i32
    %14 = arith.addi %9, %13 : i32
    %c0_9 = arith.constant 0 : index
    %15 = arith.index_cast %14 : i32 to index
    %c0_10 = arith.constant 0 : index
    %c0_11 = arith.constant 0 : index
    %16 = vector.load %arg3[%c0_9, %15, %c0_10, %c0_11] : memref<1x8x8x384xbf16, #tpu.memory_space<vmem>>, vector<1x1x8x384xbf16>
    %17 = vector.shape_cast %16 : vector<1x1x8x384xbf16> to vector<8x384xbf16>
    %18 = arith.extf %17 : vector<8x384xbf16> to vector<8x384xf32>
    %19 = arith.truncf %12 : vector<8x128xf32> to vector<8x128xbf16>
    %cst = arith.constant dense<0.000000e+00> : vector<8x384xf32>
    %20 = tpu.matmul %19, %4, %cst {dimension_numbers = #tpu.dot_dimension_numbers<[1], [0], [0], [1], [0, 0, 1, 1], [], []>} : vector<8x128xbf16>, vector<128x384xbf16>, vector<8x384xf32> -> vector<8x384xf32>
    %21 = vector.extract_strided_slice %18 {offsets = [0, 0], sizes = [8, 128], strides = [1, 1]} : vector<8x384xf32> to vector<8x128xf32>
    %22 = vector.extract_strided_slice %20 {offsets = [0, 0], sizes = [8, 128], strides = [1, 1]} : vector<8x384xf32> to vector<8x128xf32>
    %23 = arith.addf %21, %22 : vector<8x128xf32>
    %24 = arith.negf %23 : vector<8x128xf32>
    %25 = math.exp %24 : vector<8x128xf32>
    %cst_12 = arith.constant 1.000000e+00 : f32
    %26 = vector.broadcast %cst_12 : f32 to vector<8x128xf32>
    %27 = arith.addf %26, %25 : vector<8x128xf32>
    %28 = arith.divf %26, %27 : vector<8x128xf32>
    %29 = vector.extract_strided_slice %18 {offsets = [0, 128], sizes = [8, 128], strides = [1, 1]} : vector<8x384xf32> to vector<8x128xf32>
    %30 = vector.extract_strided_slice %20 {offsets = [0, 128], sizes = [8, 128], strides = [1, 1]} : vector<8x384xf32> to vector<8x128xf32>
    %31 = arith.addf %29, %30 : vector<8x128xf32>
    %32 = arith.negf %31 : vector<8x128xf32>
    %33 = math.exp %32 : vector<8x128xf32>
    %cst_13 = arith.constant 1.000000e+00 : f32
    %34 = vector.broadcast %cst_13 : f32 to vector<8x128xf32>
    %35 = arith.addf %34, %33 : vector<8x128xf32>
    %36 = arith.divf %34, %35 : vector<8x128xf32>
    %37 = vector.extract_strided_slice %18 {offsets = [0, 256], sizes = [8, 128], strides = [1, 1]} : vector<8x384xf32> to vector<8x128xf32>
    %38 = vector.extract_strided_slice %20 {offsets = [0, 256], sizes = [8, 128], strides = [1, 1]} : vector<8x384xf32> to vector<8x128xf32>
    %39 = arith.addf %38, %8 : vector<8x128xf32>
    %40 = arith.mulf %28, %39 : vector<8x128xf32>
    %41 = arith.addf %37, %40 : vector<8x128xf32>
    %42 = math.tanh %41 : vector<8x128xf32>
    %cst_14 = arith.constant 1.000000e+00 : f32
    %43 = vector.broadcast %cst_14 : f32 to vector<8x128xf32>
    %44 = arith.subf %43, %36 : vector<8x128xf32>
    %45 = arith.mulf %44, %42 : vector<8x128xf32>
    %46 = arith.mulf %36, %12 : vector<8x128xf32>
    %47 = arith.addf %45, %46 : vector<8x128xf32>
    %c0_15 = arith.constant 0 : index
    %48 = arith.index_cast %14 : i32 to index
    %c0_16 = arith.constant 0 : index
    %c0_17 = arith.constant 0 : index
    %49 = vector.load %arg6[%c0_15, %48, %c0_16, %c0_17] : memref<1x8x8x128xf32, #tpu.memory_space<vmem>>, vector<1x1x8x128xf32>
    %50 = vector.shape_cast %49 : vector<1x1x8x128xf32> to vector<8x128xf32>
    %51 = vector.shape_cast %47 : vector<8x128xf32> to vector<1x1x8x128xf32>
    tpu.vector_store %arg6[%c0_15, %48, %c0_16, %c0_17], %51 {strides = array<i32>} : memref<1x8x8x128xf32, #tpu.memory_space<vmem>>, vector<1x1x8x128xf32>,
    %c1_i32_18 = arith.constant 1 : i32
    %52 = arith.muli %11, %c1_i32_18 : i32
    %53 = arith.addi %9, %52 : i32
    %c0_19 = arith.constant 0 : index
    %54 = arith.index_cast %53 : i32 to index
    %c0_20 = arith.constant 0 : index
    %c0_21 = arith.constant 0 : index
    %55 = vector.load %arg3[%c0_19, %54, %c0_20, %c0_21] : memref<1x8x8x384xbf16, #tpu.memory_space<vmem>>, vector<1x1x8x384xbf16>
    %56 = vector.shape_cast %55 : vector<1x1x8x384xbf16> to vector<8x384xbf16>
    %57 = arith.extf %56 : vector<8x384xbf16> to vector<8x384xf32>
    %58 = arith.truncf %47 : vector<8x128xf32> to vector<8x128xbf16>
    %cst_22 = arith.constant dense<0.000000e+00> : vector<8x384xf32>
    %59 = tpu.matmul %58, %4, %cst_22 {dimension_numbers = #tpu.dot_dimension_numbers<[1], [0], [0], [1], [0, 0, 1, 1], [], []>} : vector<8x128xbf16>, vector<128x384xbf16>, vector<8x384xf32> -> vector<8x384xf32>
    %60 = vector.extract_strided_slice %57 {offsets = [0, 0], sizes = [8, 128], strides = [1, 1]} : vector<8x384xf32> to vector<8x128xf32>
    %61 = vector.extract_strided_slice %59 {offsets = [0, 0], sizes = [8, 128], strides = [1, 1]} : vector<8x384xf32> to vector<8x128xf32>
    %62 = arith.addf %60, %61 : vector<8x128xf32>
    %63 = arith.negf %62 : vector<8x128xf32>
    %64 = math.exp %63 : vector<8x128xf32>
    %cst_23 = arith.constant 1.000000e+00 : f32
    %65 = vector.broadcast %cst_23 : f32 to vector<8x128xf32>
    %66 = arith.addf %65, %64 : vector<8x128xf32>
    %67 = arith.divf %65, %66 : vector<8x128xf32>
    %68 = vector.extract_strided_slice %57 {offsets = [0, 128], sizes = [8, 128], strides = [1, 1]} : vector<8x384xf32> to vector<8x128xf32>
    %69 = vector.extract_strided_slice %59 {offsets = [0, 128], sizes = [8, 128], strides = [1, 1]} : vector<8x384xf32> to vector<8x128xf32>
    %70 = arith.addf %68, %69 : vector<8x128xf32>
    %71 = arith.negf %70 : vector<8x128xf32>
    %72 = math.exp %71 : vector<8x128xf32>
    %cst_24 = arith.constant 1.000000e+00 : f32
    %73 = vector.broadcast %cst_24 : f32 to vector<8x128xf32>
    %74 = arith.addf %73, %72 : vector<8x128xf32>
    %75 = arith.divf %73, %74 : vector<8x128xf32>
    %76 = vector.extract_strided_slice %57 {offsets = [0, 256], sizes = [8, 128], strides = [1, 1]} : vector<8x384xf32> to vector<8x128xf32>
    %77 = vector.extract_strided_slice %59 {offsets = [0, 256], sizes = [8, 128], strides = [1, 1]} : vector<8x384xf32> to vector<8x128xf32>
    %78 = arith.addf %77, %8 : vector<8x128xf32>
    %79 = arith.mulf %67, %78 : vector<8x128xf32>
    %80 = arith.addf %76, %79 : vector<8x128xf32>
    %81 = math.tanh %80 : vector<8x128xf32>
    %cst_25 = arith.constant 1.000000e+00 : f32
    %82 = vector.broadcast %cst_25 : f32 to vector<8x128xf32>
    %83 = arith.subf %82, %75 : vector<8x128xf32>
    %84 = arith.mulf %83, %81 : vector<8x128xf32>
    %85 = arith.mulf %75, %47 : vector<8x128xf32>
    %86 = arith.addf %84, %85 : vector<8x128xf32>
    %c0_26 = arith.constant 0 : index
    %87 = arith.index_cast %53 : i32 to index
    %c0_27 = arith.constant 0 : index
    %c0_28 = arith.constant 0 : index
    %88 = vector.load %arg6[%c0_26, %87, %c0_27, %c0_28] : memref<1x8x8x128xf32, #tpu.memory_space<vmem>>, vector<1x1x8x128xf32>
    %89 = vector.shape_cast %88 : vector<1x1x8x128xf32> to vector<8x128xf32>
    %90 = vector.shape_cast %86 : vector<8x128xf32> to vector<1x1x8x128xf32>
    tpu.vector_store %arg6[%c0_26, %87, %c0_27, %c0_28], %90 {strides = array<i32>} : memref<1x8x8x128xf32, #tpu.memory_space<vmem>>, vector<1x1x8x128xf32>,
    %c2_i32_29 = arith.constant 2 : i32
    %91 = arith.muli %11, %c2_i32_29 : i32
    %92 = arith.addi %9, %91 : i32
    %c0_30 = arith.constant 0 : index
    %93 = arith.index_cast %92 : i32 to index
    %c0_31 = arith.constant 0 : index
    %c0_32 = arith.constant 0 : index
    %94 = vector.load %arg3[%c0_30, %93, %c0_31, %c0_32] : memref<1x8x8x384xbf16, #tpu.memory_space<vmem>>, vector<1x1x8x384xbf16>
    %95 = vector.shape_cast %94 : vector<1x1x8x384xbf16> to vector<8x384xbf16>
    %96 = arith.extf %95 : vector<8x384xbf16> to vector<8x384xf32>
    %97 = arith.truncf %86 : vector<8x128xf32> to vector<8x128xbf16>
    %cst_33 = arith.constant dense<0.000000e+00> : vector<8x384xf32>
    %98 = tpu.matmul %97, %4, %cst_33 {dimension_numbers = #tpu.dot_dimension_numbers<[1], [0], [0], [1], [0, 0, 1, 1], [], []>} : vector<8x128xbf16>, vector<128x384xbf16>, vector<8x384xf32> -> vector<8x384xf32>
    %99 = vector.extract_strided_slice %96 {offsets = [0, 0], sizes = [8, 128], strides = [1, 1]} : vector<8x384xf32> to vector<8x128xf32>
    %100 = vector.extract_strided_slice %98 {offsets = [0, 0], sizes = [8, 128], strides = [1, 1]} : vector<8x384xf32> to vector<8x128xf32>
    %101 = arith.addf %99, %100 : vector<8x128xf32>
    %102 = arith.negf %101 : vector<8x128xf32>
    %103 = math.exp %102 : vector<8x128xf32>
    %cst_34 = arith.constant 1.000000e+00 : f32
    %104 = vector.broadcast %cst_34 : f32 to vector<8x128xf32>
    %105 = arith.addf %104, %103 : vector<8x128xf32>
    %106 = arith.divf %104, %105 : vector<8x128xf32>
    %107 = vector.extract_strided_slice %96 {offsets = [0, 128], sizes = [8, 128], strides = [1, 1]} : vector<8x384xf32> to vector<8x128xf32>
    %108 = vector.extract_strided_slice %98 {offsets = [0, 128], sizes = [8, 128], strides = [1, 1]} : vector<8x384xf32> to vector<8x128xf32>
    %109 = arith.addf %107, %108 : vector<8x128xf32>
    %110 = arith.negf %109 : vector<8x128xf32>
    %111 = math.exp %110 : vector<8x128xf32>
    %cst_35 = arith.constant 1.000000e+00 : f32
    %112 = vector.broadcast %cst_35 : f32 to vector<8x128xf32>
    %113 = arith.addf %112, %111 : vector<8x128xf32>
    %114 = arith.divf %112, %113 : vector<8x128xf32>
    %115 = vector.extract_strided_slice %96 {offsets = [0, 256], sizes = [8, 128], strides = [1, 1]} : vector<8x384xf32> to vector<8x128xf32>
    %116 = vector.extract_strided_slice %98 {offsets = [0, 256], sizes = [8, 128], strides = [1, 1]} : vector<8x384xf32> to vector<8x128xf32>
    %117 = arith.addf %116, %8 : vector<8x128xf32>
    %118 = arith.mulf %106, %117 : vector<8x128xf32>
    %119 = arith.addf %115, %118 : vector<8x128xf32>
    %120 = math.tanh %119 : vector<8x128xf32>
    %cst_36 = arith.constant 1.000000e+00 : f32
    %121 = vector.broadcast %cst_36 : f32 to vector<8x128xf32>
    %122 = arith.subf %121, %114 : vector<8x128xf32>
    %123 = arith.mulf %122, %120 : vector<8x128xf32>
    %124 = arith.mulf %114, %86 : vector<8x128xf32>
    %125 = arith.addf %123, %124 : vector<8x128xf32>
    %c0_37 = arith.constant 0 : index
    %126 = arith.index_cast %92 : i32 to index
    %c0_38 = arith.constant 0 : index
    %c0_39 = arith.constant 0 : index
    %127 = vector.load %arg6[%c0_37, %126, %c0_38, %c0_39] : memref<1x8x8x128xf32, #tpu.memory_space<vmem>>, vector<1x1x8x128xf32>
    %128 = vector.shape_cast %127 : vector<1x1x8x128xf32> to vector<8x128xf32>
    %129 = vector.shape_cast %125 : vector<8x128xf32> to vector<1x1x8x128xf32>
    tpu.vector_store %arg6[%c0_37, %126, %c0_38, %c0_39], %129 {strides = array<i32>} : memref<1x8x8x128xf32, #tpu.memory_space<vmem>>, vector<1x1x8x128xf32>,
    %c3_i32 = arith.constant 3 : i32
    %130 = arith.muli %11, %c3_i32 : i32
    %131 = arith.addi %9, %130 : i32
    %c0_40 = arith.constant 0 : index
    %132 = arith.index_cast %131 : i32 to index
    %c0_41 = arith.constant 0 : index
    %c0_42 = arith.constant 0 : index
    %133 = vector.load %arg3[%c0_40, %132, %c0_41, %c0_42] : memref<1x8x8x384xbf16, #tpu.memory_space<vmem>>, vector<1x1x8x384xbf16>
    %134 = vector.shape_cast %133 : vector<1x1x8x384xbf16> to vector<8x384xbf16>
    %135 = arith.extf %134 : vector<8x384xbf16> to vector<8x384xf32>
    %136 = arith.truncf %125 : vector<8x128xf32> to vector<8x128xbf16>
    %cst_43 = arith.constant dense<0.000000e+00> : vector<8x384xf32>
    %137 = tpu.matmul %136, %4, %cst_43 {dimension_numbers = #tpu.dot_dimension_numbers<[1], [0], [0], [1], [0, 0, 1, 1], [], []>} : vector<8x128xbf16>, vector<128x384xbf16>, vector<8x384xf32> -> vector<8x384xf32>
    %138 = vector.extract_strided_slice %135 {offsets = [0, 0], sizes = [8, 128], strides = [1, 1]} : vector<8x384xf32> to vector<8x128xf32>
    %139 = vector.extract_strided_slice %137 {offsets = [0, 0], sizes = [8, 128], strides = [1, 1]} : vector<8x384xf32> to vector<8x128xf32>
    %140 = arith.addf %138, %139 : vector<8x128xf32>
    %141 = arith.negf %140 : vector<8x128xf32>
    %142 = math.exp %141 : vector<8x128xf32>
    %cst_44 = arith.constant 1.000000e+00 : f32
    %143 = vector.broadcast %cst_44 : f32 to vector<8x128xf32>
    %144 = arith.addf %143, %142 : vector<8x128xf32>
    %145 = arith.divf %143, %144 : vector<8x128xf32>
    %146 = vector.extract_strided_slice %135 {offsets = [0, 128], sizes = [8, 128], strides = [1, 1]} : vector<8x384xf32> to vector<8x128xf32>
    %147 = vector.extract_strided_slice %137 {offsets = [0, 128], sizes = [8, 128], strides = [1, 1]} : vector<8x384xf32> to vector<8x128xf32>
    %148 = arith.addf %146, %147 : vector<8x128xf32>
    %149 = arith.negf %148 : vector<8x128xf32>
    %150 = math.exp %149 : vector<8x128xf32>
    %cst_45 = arith.constant 1.000000e+00 : f32
    %151 = vector.broadcast %cst_45 : f32 to vector<8x128xf32>
    %152 = arith.addf %151, %150 : vector<8x128xf32>
    %153 = arith.divf %151, %152 : vector<8x128xf32>
    %154 = vector.extract_strided_slice %135 {offsets = [0, 256], sizes = [8, 128], strides = [1, 1]} : vector<8x384xf32> to vector<8x128xf32>
    %155 = vector.extract_strided_slice %137 {offsets = [0, 256], sizes = [8, 128], strides = [1, 1]} : vector<8x384xf32> to vector<8x128xf32>
    %156 = arith.addf %155, %8 : vector<8x128xf32>
    %157 = arith.mulf %145, %156 : vector<8x128xf32>
    %158 = arith.addf %154, %157 : vector<8x128xf32>
    %159 = math.tanh %158 : vector<8x128xf32>
    %cst_46 = arith.constant 1.000000e+00 : f32
    %160 = vector.broadcast %cst_46 : f32 to vector<8x128xf32>
    %161 = arith.subf %160, %153 : vector<8x128xf32>
    %162 = arith.mulf %161, %159 : vector<8x128xf32>
    %163 = arith.mulf %153, %125 : vector<8x128xf32>
    %164 = arith.addf %162, %163 : vector<8x128xf32>
    %c0_47 = arith.constant 0 : index
    %165 = arith.index_cast %131 : i32 to index
    %c0_48 = arith.constant 0 : index
    %c0_49 = arith.constant 0 : index
    %166 = vector.load %arg6[%c0_47, %165, %c0_48, %c0_49] : memref<1x8x8x128xf32, #tpu.memory_space<vmem>>, vector<1x1x8x128xf32>
    %167 = vector.shape_cast %166 : vector<1x1x8x128xf32> to vector<8x128xf32>
    %168 = vector.shape_cast %164 : vector<8x128xf32> to vector<1x1x8x128xf32>
    tpu.vector_store %arg6[%c0_47, %165, %c0_48, %c0_49], %168 {strides = array<i32>} : memref<1x8x8x128xf32, #tpu.memory_space<vmem>>, vector<1x1x8x128xf32>,
    %c4_i32 = arith.constant 4 : i32
    %169 = arith.muli %11, %c4_i32 : i32
    %170 = arith.addi %9, %169 : i32
    %c0_50 = arith.constant 0 : index
    %171 = arith.index_cast %170 : i32 to index
    %c0_51 = arith.constant 0 : index
    %c0_52 = arith.constant 0 : index
    %172 = vector.load %arg3[%c0_50, %171, %c0_51, %c0_52] : memref<1x8x8x384xbf16, #tpu.memory_space<vmem>>, vector<1x1x8x384xbf16>
    %173 = vector.shape_cast %172 : vector<1x1x8x384xbf16> to vector<8x384xbf16>
    %174 = arith.extf %173 : vector<8x384xbf16> to vector<8x384xf32>
    %175 = arith.truncf %164 : vector<8x128xf32> to vector<8x128xbf16>
    %cst_53 = arith.constant dense<0.000000e+00> : vector<8x384xf32>
    %176 = tpu.matmul %175, %4, %cst_53 {dimension_numbers = #tpu.dot_dimension_numbers<[1], [0], [0], [1], [0, 0, 1, 1], [], []>} : vector<8x128xbf16>, vector<128x384xbf16>, vector<8x384xf32> -> vector<8x384xf32>
    %177 = vector.extract_strided_slice %174 {offsets = [0, 0], sizes = [8, 128], strides = [1, 1]} : vector<8x384xf32> to vector<8x128xf32>
    %178 = vector.extract_strided_slice %176 {offsets = [0, 0], sizes = [8, 128], strides = [1, 1]} : vector<8x384xf32> to vector<8x128xf32>
    %179 = arith.addf %177, %178 : vector<8x128xf32>
    %180 = arith.negf %179 : vector<8x128xf32>
    %181 = math.exp %180 : vector<8x128xf32>
    %cst_54 = arith.constant 1.000000e+00 : f32
    %182 = vector.broadcast %cst_54 : f32 to vector<8x128xf32>
    %183 = arith.addf %182, %181 : vector<8x128xf32>
    %184 = arith.divf %182, %183 : vector<8x128xf32>
    %185 = vector.extract_strided_slice %174 {offsets = [0, 128], sizes = [8, 128], strides = [1, 1]} : vector<8x384xf32> to vector<8x128xf32>
    %186 = vector.extract_strided_slice %176 {offsets = [0, 128], sizes = [8, 128], strides = [1, 1]} : vector<8x384xf32> to vector<8x128xf32>
    %187 = arith.addf %185, %186 : vector<8x128xf32>
    %188 = arith.negf %187 : vector<8x128xf32>
    %189 = math.exp %188 : vector<8x128xf32>
    %cst_55 = arith.constant 1.000000e+00 : f32
    %190 = vector.broadcast %cst_55 : f32 to vector<8x128xf32>
    %191 = arith.addf %190, %189 : vector<8x128xf32>
    %192 = arith.divf %190, %191 : vector<8x128xf32>
    %193 = vector.extract_strided_slice %174 {offsets = [0, 256], sizes = [8, 128], strides = [1, 1]} : vector<8x384xf32> to vector<8x128xf32>
    %194 = vector.extract_strided_slice %176 {offsets = [0, 256], sizes = [8, 128], strides = [1, 1]} : vector<8x384xf32> to vector<8x128xf32>
    %195 = arith.addf %194, %8 : vector<8x128xf32>
    %196 = arith.mulf %184, %195 : vector<8x128xf32>
    %197 = arith.addf %193, %196 : vector<8x128xf32>
    %198 = math.tanh %197 : vector<8x128xf32>
    %cst_56 = arith.constant 1.000000e+00 : f32
    %199 = vector.broadcast %cst_56 : f32 to vector<8x128xf32>
    %200 = arith.subf %199, %192 : vector<8x128xf32>
    %201 = arith.mulf %200, %198 : vector<8x128xf32>
    %202 = arith.mulf %192, %164 : vector<8x128xf32>
    %203 = arith.addf %201, %202 : vector<8x128xf32>
    %c0_57 = arith.constant 0 : index
    %204 = arith.index_cast %170 : i32 to index
    %c0_58 = arith.constant 0 : index
    %c0_59 = arith.constant 0 : index
    %205 = vector.load %arg6[%c0_57, %204, %c0_58, %c0_59] : memref<1x8x8x128xf32, #tpu.memory_space<vmem>>, vector<1x1x8x128xf32>
    %206 = vector.shape_cast %205 : vector<1x1x8x128xf32> to vector<8x128xf32>
    %207 = vector.shape_cast %203 : vector<8x128xf32> to vector<1x1x8x128xf32>
    tpu.vector_store %arg6[%c0_57, %204, %c0_58, %c0_59], %207 {strides = array<i32>} : memref<1x8x8x128xf32, #tpu.memory_space<vmem>>, vector<1x1x8x128xf32>,
    %c5_i32 = arith.constant 5 : i32
    %208 = arith.muli %11, %c5_i32 : i32
    %209 = arith.addi %9, %208 : i32
    %c0_60 = arith.constant 0 : index
    %210 = arith.index_cast %209 : i32 to index
    %c0_61 = arith.constant 0 : index
    %c0_62 = arith.constant 0 : index
    %211 = vector.load %arg3[%c0_60, %210, %c0_61, %c0_62] : memref<1x8x8x384xbf16, #tpu.memory_space<vmem>>, vector<1x1x8x384xbf16>
    %212 = vector.shape_cast %211 : vector<1x1x8x384xbf16> to vector<8x384xbf16>
    %213 = arith.extf %212 : vector<8x384xbf16> to vector<8x384xf32>
    %214 = arith.truncf %203 : vector<8x128xf32> to vector<8x128xbf16>
    %cst_63 = arith.constant dense<0.000000e+00> : vector<8x384xf32>
    %215 = tpu.matmul %214, %4, %cst_63 {dimension_numbers = #tpu.dot_dimension_numbers<[1], [0], [0], [1], [0, 0, 1, 1], [], []>} : vector<8x128xbf16>, vector<128x384xbf16>, vector<8x384xf32> -> vector<8x384xf32>
    %216 = vector.extract_strided_slice %213 {offsets = [0, 0], sizes = [8, 128], strides = [1, 1]} : vector<8x384xf32> to vector<8x128xf32>
    %217 = vector.extract_strided_slice %215 {offsets = [0, 0], sizes = [8, 128], strides = [1, 1]} : vector<8x384xf32> to vector<8x128xf32>
    %218 = arith.addf %216, %217 : vector<8x128xf32>
    %219 = arith.negf %218 : vector<8x128xf32>
    %220 = math.exp %219 : vector<8x128xf32>
    %cst_64 = arith.constant 1.000000e+00 : f32
    %221 = vector.broadcast %cst_64 : f32 to vector<8x128xf32>
    %222 = arith.addf %221, %220 : vector<8x128xf32>
    %223 = arith.divf %221, %222 : vector<8x128xf32>
    %224 = vector.extract_strided_slice %213 {offsets = [0, 128], sizes = [8, 128], strides = [1, 1]} : vector<8x384xf32> to vector<8x128xf32>
    %225 = vector.extract_strided_slice %215 {offsets = [0, 128], sizes = [8, 128], strides = [1, 1]} : vector<8x384xf32> to vector<8x128xf32>
    %226 = arith.addf %224, %225 : vector<8x128xf32>
    %227 = arith.negf %226 : vector<8x128xf32>
    %228 = math.exp %227 : vector<8x128xf32>
    %cst_65 = arith.constant 1.000000e+00 : f32
    %229 = vector.broadcast %cst_65 : f32 to vector<8x128xf32>
    %230 = arith.addf %229, %228 : vector<8x128xf32>
    %231 = arith.divf %229, %230 : vector<8x128xf32>
    %232 = vector.extract_strided_slice %213 {offsets = [0, 256], sizes = [8, 128], strides = [1, 1]} : vector<8x384xf32> to vector<8x128xf32>
    %233 = vector.extract_strided_slice %215 {offsets = [0, 256], sizes = [8, 128], strides = [1, 1]} : vector<8x384xf32> to vector<8x128xf32>
    %234 = arith.addf %233, %8 : vector<8x128xf32>
    %235 = arith.mulf %223, %234 : vector<8x128xf32>
    %236 = arith.addf %232, %235 : vector<8x128xf32>
    %237 = math.tanh %236 : vector<8x128xf32>
    %cst_66 = arith.constant 1.000000e+00 : f32
    %238 = vector.broadcast %cst_66 : f32 to vector<8x128xf32>
    %239 = arith.subf %238, %231 : vector<8x128xf32>
    %240 = arith.mulf %239, %237 : vector<8x128xf32>
    %241 = arith.mulf %231, %203 : vector<8x128xf32>
    %242 = arith.addf %240, %241 : vector<8x128xf32>
    %c0_67 = arith.constant 0 : index
    %243 = arith.index_cast %209 : i32 to index
    %c0_68 = arith.constant 0 : index
    %c0_69 = arith.constant 0 : index
    %244 = vector.load %arg6[%c0_67, %243, %c0_68, %c0_69] : memref<1x8x8x128xf32, #tpu.memory_space<vmem>>, vector<1x1x8x128xf32>
    %245 = vector.shape_cast %244 : vector<1x1x8x128xf32> to vector<8x128xf32>
    %246 = vector.shape_cast %242 : vector<8x128xf32> to vector<1x1x8x128xf32>
    tpu.vector_store %arg6[%c0_67, %243, %c0_68, %c0_69], %246 {strides = array<i32>} : memref<1x8x8x128xf32, #tpu.memory_space<vmem>>, vector<1x1x8x128xf32>,
    %c6_i32 = arith.constant 6 : i32
    %247 = arith.muli %11, %c6_i32 : i32
    %248 = arith.addi %9, %247 : i32
    %c0_70 = arith.constant 0 : index
    %249 = arith.index_cast %248 : i32 to index
    %c0_71 = arith.constant 0 : index
    %c0_72 = arith.constant 0 : index
    %250 = vector.load %arg3[%c0_70, %249, %c0_71, %c0_72] : memref<1x8x8x384xbf16, #tpu.memory_space<vmem>>, vector<1x1x8x384xbf16>
    %251 = vector.shape_cast %250 : vector<1x1x8x384xbf16> to vector<8x384xbf16>
    %252 = arith.extf %251 : vector<8x384xbf16> to vector<8x384xf32>
    %253 = arith.truncf %242 : vector<8x128xf32> to vector<8x128xbf16>
    %cst_73 = arith.constant dense<0.000000e+00> : vector<8x384xf32>
    %254 = tpu.matmul %253, %4, %cst_73 {dimension_numbers = #tpu.dot_dimension_numbers<[1], [0], [0], [1], [0, 0, 1, 1], [], []>} : vector<8x128xbf16>, vector<128x384xbf16>, vector<8x384xf32> -> vector<8x384xf32>
    %255 = vector.extract_strided_slice %252 {offsets = [0, 0], sizes = [8, 128], strides = [1, 1]} : vector<8x384xf32> to vector<8x128xf32>
    %256 = vector.extract_strided_slice %254 {offsets = [0, 0], sizes = [8, 128], strides = [1, 1]} : vector<8x384xf32> to vector<8x128xf32>
    %257 = arith.addf %255, %256 : vector<8x128xf32>
    %258 = arith.negf %257 : vector<8x128xf32>
    %259 = math.exp %258 : vector<8x128xf32>
    %cst_74 = arith.constant 1.000000e+00 : f32
    %260 = vector.broadcast %cst_74 : f32 to vector<8x128xf32>
    %261 = arith.addf %260, %259 : vector<8x128xf32>
    %262 = arith.divf %260, %261 : vector<8x128xf32>
    %263 = vector.extract_strided_slice %252 {offsets = [0, 128], sizes = [8, 128], strides = [1, 1]} : vector<8x384xf32> to vector<8x128xf32>
    %264 = vector.extract_strided_slice %254 {offsets = [0, 128], sizes = [8, 128], strides = [1, 1]} : vector<8x384xf32> to vector<8x128xf32>
    %265 = arith.addf %263, %264 : vector<8x128xf32>
    %266 = arith.negf %265 : vector<8x128xf32>
    %267 = math.exp %266 : vector<8x128xf32>
    %cst_75 = arith.constant 1.000000e+00 : f32
    %268 = vector.broadcast %cst_75 : f32 to vector<8x128xf32>
    %269 = arith.addf %268, %267 : vector<8x128xf32>
    %270 = arith.divf %268, %269 : vector<8x128xf32>
    %271 = vector.extract_strided_slice %252 {offsets = [0, 256], sizes = [8, 128], strides = [1, 1]} : vector<8x384xf32> to vector<8x128xf32>
    %272 = vector.extract_strided_slice %254 {offsets = [0, 256], sizes = [8, 128], strides = [1, 1]} : vector<8x384xf32> to vector<8x128xf32>
    %273 = arith.addf %272, %8 : vector<8x128xf32>
    %274 = arith.mulf %262, %273 : vector<8x128xf32>
    %275 = arith.addf %271, %274 : vector<8x128xf32>
    %276 = math.tanh %275 : vector<8x128xf32>
    %cst_76 = arith.constant 1.000000e+00 : f32
    %277 = vector.broadcast %cst_76 : f32 to vector<8x128xf32>
    %278 = arith.subf %277, %270 : vector<8x128xf32>
    %279 = arith.mulf %278, %276 : vector<8x128xf32>
    %280 = arith.mulf %270, %242 : vector<8x128xf32>
    %281 = arith.addf %279, %280 : vector<8x128xf32>
    %c0_77 = arith.constant 0 : index
    %282 = arith.index_cast %248 : i32 to index
    %c0_78 = arith.constant 0 : index
    %c0_79 = arith.constant 0 : index
    %283 = vector.load %arg6[%c0_77, %282, %c0_78, %c0_79] : memref<1x8x8x128xf32, #tpu.memory_space<vmem>>, vector<1x1x8x128xf32>
    %284 = vector.shape_cast %283 : vector<1x1x8x128xf32> to vector<8x128xf32>
    %285 = vector.shape_cast %281 : vector<8x128xf32> to vector<1x1x8x128xf32>
    tpu.vector_store %arg6[%c0_77, %282, %c0_78, %c0_79], %285 {strides = array<i32>} : memref<1x8x8x128xf32, #tpu.memory_space<vmem>>, vector<1x1x8x128xf32>,
    %c7_i32_80 = arith.constant 7 : i32
    %286 = arith.muli %11, %c7_i32_80 : i32
    %287 = arith.addi %9, %286 : i32
    %c0_81 = arith.constant 0 : index
    %288 = arith.index_cast %287 : i32 to index
    %c0_82 = arith.constant 0 : index
    %c0_83 = arith.constant 0 : index
    %289 = vector.load %arg3[%c0_81, %288, %c0_82, %c0_83] : memref<1x8x8x384xbf16, #tpu.memory_space<vmem>>, vector<1x1x8x384xbf16>
    %290 = vector.shape_cast %289 : vector<1x1x8x384xbf16> to vector<8x384xbf16>
    %291 = arith.extf %290 : vector<8x384xbf16> to vector<8x384xf32>
    %292 = arith.truncf %281 : vector<8x128xf32> to vector<8x128xbf16>
    %cst_84 = arith.constant dense<0.000000e+00> : vector<8x384xf32>
    %293 = tpu.matmul %292, %4, %cst_84 {dimension_numbers = #tpu.dot_dimension_numbers<[1], [0], [0], [1], [0, 0, 1, 1], [], []>} : vector<8x128xbf16>, vector<128x384xbf16>, vector<8x384xf32> -> vector<8x384xf32>
    %294 = vector.extract_strided_slice %291 {offsets = [0, 0], sizes = [8, 128], strides = [1, 1]} : vector<8x384xf32> to vector<8x128xf32>
    %295 = vector.extract_strided_slice %293 {offsets = [0, 0], sizes = [8, 128], strides = [1, 1]} : vector<8x384xf32> to vector<8x128xf32>
    %296 = arith.addf %294, %295 : vector<8x128xf32>
    %297 = arith.negf %296 : vector<8x128xf32>
    %298 = math.exp %297 : vector<8x128xf32>
    %cst_85 = arith.constant 1.000000e+00 : f32
    %299 = vector.broadcast %cst_85 : f32 to vector<8x128xf32>
    %300 = arith.addf %299, %298 : vector<8x128xf32>
    %301 = arith.divf %299, %300 : vector<8x128xf32>
    %302 = vector.extract_strided_slice %291 {offsets = [0, 128], sizes = [8, 128], strides = [1, 1]} : vector<8x384xf32> to vector<8x128xf32>
    %303 = vector.extract_strided_slice %293 {offsets = [0, 128], sizes = [8, 128], strides = [1, 1]} : vector<8x384xf32> to vector<8x128xf32>
    %304 = arith.addf %302, %303 : vector<8x128xf32>
    %305 = arith.negf %304 : vector<8x128xf32>
    %306 = math.exp %305 : vector<8x128xf32>
    %cst_86 = arith.constant 1.000000e+00 : f32
    %307 = vector.broadcast %cst_86 : f32 to vector<8x128xf32>
    %308 = arith.addf %307, %306 : vector<8x128xf32>
    %309 = arith.divf %307, %308 : vector<8x128xf32>
    %310 = vector.extract_strided_slice %291 {offsets = [0, 256], sizes = [8, 128], strides = [1, 1]} : vector<8x384xf32> to vector<8x128xf32>
    %311 = vector.extract_strided_slice %293 {offsets = [0, 256], sizes = [8, 128], strides = [1, 1]} : vector<8x384xf32> to vector<8x128xf32>
    %312 = arith.addf %311, %8 : vector<8x128xf32>
    %313 = arith.mulf %301, %312 : vector<8x128xf32>
    %314 = arith.addf %310, %313 : vector<8x128xf32>
    %315 = math.tanh %314 : vector<8x128xf32>
    %cst_87 = arith.constant 1.000000e+00 : f32
    %316 = vector.broadcast %cst_87 : f32 to vector<8x128xf32>
    %317 = arith.subf %316, %309 : vector<8x128xf32>
    %318 = arith.mulf %317, %315 : vector<8x128xf32>
    %319 = arith.mulf %309, %281 : vector<8x128xf32>
    %320 = arith.addf %318, %319 : vector<8x128xf32>
    %c0_88 = arith.constant 0 : index
    %321 = arith.index_cast %287 : i32 to index
    %c0_89 = arith.constant 0 : index
    %c0_90 = arith.constant 0 : index
    %322 = vector.load %arg6[%c0_88, %321, %c0_89, %c0_90] : memref<1x8x8x128xf32, #tpu.memory_space<vmem>>, vector<1x1x8x128xf32>
    %323 = vector.shape_cast %322 : vector<1x1x8x128xf32> to vector<8x128xf32>
    %324 = vector.shape_cast %320 : vector<8x128xf32> to vector<1x1x8x128xf32>
    tpu.vector_store %arg6[%c0_88, %321, %c0_89, %c0_90], %324 {strides = array<i32>} : memref<1x8x8x128xf32, #tpu.memory_space<vmem>>, vector<1x1x8x128xf32>,
    %c8_i32 = arith.constant 8 : i32
    %c0_91 = arith.constant 0 : index
    %c0_92 = arith.constant 0 : index
    %325 = vector.load %arg7[%c0_91, %c0_92] : memref<8x128xf32, #tpu.memory_space<vmem>>, vector<8x128xf32>
    tpu.vector_store %arg7[%c0_91, %c0_92], %320 {strides = array<i32>} : memref<8x128xf32, #tpu.memory_space<vmem>>, vector<8x128xf32>,
    return
  }
  func.func @transform_0(%arg0: i32, %arg1: i32, %arg2: i32) -> (i32, i32, i32, i32) {
    %c0_i32 = arith.constant 0 : i32
    %0 = arith.muli %arg0, %c0_i32 : i32
    %c2_i32 = arith.constant 2 : i32
    %1 = arith.muli %c2_i32, %arg0 : i32
    %c1_i32 = arith.constant 1 : i32
    %2 = arith.subi %c1_i32, %1 : i32
    %3 = arith.muli %2, %arg2 : i32
    %4 = arith.addi %0, %3 : i32
    %c0_i32_0 = arith.constant 0 : i32
    %c0_i32_1 = arith.constant 0 : i32
    return %arg0, %4, %arg1, %c0_i32_0 : i32, i32, i32, i32
  }
  func.func @transform_1(%arg0: i32, %arg1: i32, %arg2: i32) -> (i32, i32, i32) {
    %c0_i32 = arith.constant 0 : i32
    %c0_i32_0 = arith.constant 0 : i32
    %c0_i32_1 = arith.constant 0 : i32
    return %arg0, %c0_i32, %c0_i32_0 : i32, i32, i32
  }
  func.func @transform_2(%arg0: i32, %arg1: i32, %arg2: i32) -> (i32, i32, i32) {
    %c0_i32 = arith.constant 0 : i32
    %c0_i32_0 = arith.constant 0 : i32
    %c0_i32_1 = arith.constant 0 : i32
    return %arg0, %c0_i32, %c0_i32_0 : i32, i32, i32
  }
  func.func @transform_3(%arg0: i32, %arg1: i32, %arg2: i32) -> (i32, i32, i32, i32) {
    %c0_i32 = arith.constant 0 : i32
    %0 = arith.muli %arg0, %c0_i32 : i32
    %c2_i32 = arith.constant 2 : i32
    %1 = arith.muli %c2_i32, %arg0 : i32
    %c1_i32 = arith.constant 1 : i32
    %2 = arith.subi %c1_i32, %1 : i32
    %3 = arith.muli %2, %arg2 : i32
    %4 = arith.addi %0, %3 : i32
    %c0_i32_0 = arith.constant 0 : i32
    %c0_i32_1 = arith.constant 0 : i32
    return %arg0, %4, %arg1, %c0_i32_0 : i32, i32, i32, i32
  }
}

</mosaic_0001>

<llo_original>
// kernel: title_encoder_forward.1
$region0: #{title_encoder_forward.1}
  #allocation0 [shape = 'u32[]', space=smem, size = 0x4, offset = 0x4, fixed_abs, tag = 'smem constant byte address 0x4 - core index']
  #allocation1 [shape = 'u32[144,128]{1,0:T(1,128)}', space=vmem, size = 0x12000, scoped, tag = 'internal scratch']
  #allocation2 [shape = 'f32[8,128]{1,0:T(8,128)}', space=vmem, size = 0x1000, scoped, tag = 'scratch operand']
  %s0 = inlined_call_operand.vmem [shape: bf16[2,8,8,384], index: 0, kind: input, shape index: {}]
  %s1 = inlined_call_operand.vmem [shape: bf16[2,128,384], index: 1, kind: input, shape index: {}]
  %s2 = inlined_call_operand.vmem [shape: f32[2,1,128], index: 2, kind: input, shape index: {}]
  %s3 = inlined_call_operand.vmem [shape: f32[2,8,8,128], index: 3, kind: output, shape index: {}]
  %s4 = sld [smem:[#allocation0]]
  $region49: #{title_encoder_forward.1} parent=0
    _
  %s6 = ssub.s32 1, %s4
  %s7 = scalar_select 0, %s6, %s4
  loop: start=0, step=1, limit=4
  $region2: #{title_encoder_forward.1} parent=0 // loop_pre_header
    _
  $region3: #{title_encoder_forward.1} parent=0 // loop_header
    %s9 = sphi 0, %s13
    %p10 = scmp.ge.s32.totalorder %s9, 4
    %s16 = sphi 0, %s35
    %s17 = sphi 0, %s31
    %s18 = sphi 0, %s27
    %s19 = sphi 0, %s16
    %s20 = sphi 0, %s17
    %s21 = sphi 0, %s18
    %s22 = sphi 0, %s19
    %s23 = sphi 0, %s20
    %s24 = sphi 0, %s21
    %s48 = sphi 0, %s50
    %s51 = sphi 0, %s48
    %s52 = sphi 0, %s51
    %s68 = sphi 0, %s52
    %s74 = sphi 0, %s76
    %s77 = sphi 0, %s74
    %s78 = sphi 0, %s77
    %s94 = sphi 0, %s78
    %s100 = sphi 0, %s102
    %s103 = sphi 0, %s100
    %s104 = sphi 0, %s103
    %s120 = sphi 0, %s104
    %s136 = sphi 0, %s138
    %s139 = sphi 0, %s136
    %s140 = sphi 0, %s139
    %s156 = sphi 0, %s140
  $region4: #{title_encoder_forward.1} parent=0 // loop_header_branch
    %12 = sbr.rel (%p10) target = $region8
  $region5: #{title_encoder_forward.1} parent=0 // loop_body
    %s14 = ssub.s32 %s9, 1
    %s15 = ssub.s32 %s9, 2
    %s25 = sadd.s32 1, %s18
    %p26 = scmp.ge.s32.totalorder %s25, 1
    %s27 = scalar_select %p26, 0, %s25
    %s28 = sadd.s32 1, %s17
    %s29 = scalar_select %p26, %s28, %s17
    %p30 = scmp.ge.s32.totalorder %s29, 1
    %s31 = scalar_select %p30, 0, %s29
    %s32 = sadd.s32 1, %s16
    %s33 = scalar_select %p30, %s32, %s16
    %p34 = scmp.ge.s32.totalorder %s33, 2
    %s35 = scalar_select %p34, 0, %s33
    %s36 = smul.u32 %s16, 2
    %s37 = ssub.s32 1, %s36
    %s38 = smul.u32 %s37, %s18
    %s39 = smul.u32 %s35, 2
    %s40 = ssub.s32 1, %s39
    %s41 = smul.u32 %s40, %s27
    %s42 = ssub.s32 %s16, %s35
    %s43 = ssub.s32 %s38, %s41
    %s44 = sor.u32 %s42, %s43
    %s45 = ssub.s32 %s17, %s31
    %s46 = sor.u32 %s44, %s45
    %p47 = scmp.eq.s32.totalorder %s46, 0
    %s49 = sadd.s32 %s48, 1
    %s50 = scalar_select %p47, %s48, %s49
    %p53 = pneg %p47
    %p54 = scmp.eq.s32.totalorder %s9, 1
    %p55 = por %p53, %p54
    %p56 = scmp.ne.s32.totalorder %s48, %s51
    %p57 = scmp.eq.s32.totalorder %s9, 0
    %p58 = por %p56, %p57
    %p59 = scmp.ne.s32.totalorder %s48, %s51
    %p60 = scmp.eq.s32.totalorder %s14, 1
    %p61 = por %p59, %p60
    %p62 = scmp.ne.s32.totalorder %s51, %s52
    %p63 = scmp.eq.s32.totalorder %s14, 0
    %p64 = por %p62, %p63
    %p65 = scmp.ne.s32.totalorder %s51, %s52
    %p66 = scmp.eq.s32.totalorder %s15, 1
    %p67 = por %p65, %p66
    %p69 = scmp.ne.s32.totalorder %s52, %s68
    %p70 = scmp.eq.s32.totalorder %s15, 0
    %p71 = por %p69, %p70
    %s72 = ssub.s32 %s16, %s35
    %p73 = scmp.eq.s32.totalorder %s72, 0
    %s75 = sadd.s32 %s74, 1
    %s76 = scalar_select %p73, %s74, %s75
    %p79 = pneg %p73
    %p80 = scmp.eq.s32.totalorder %s9, 1
    %p81 = por %p79, %p80
    %p82 = scmp.ne.s32.totalorder %s74, %s77
    %p83 = scmp.eq.s32.totalorder %s9, 0
    %p84 = por %p82, %p83
    %p85 = scmp.ne.s32.totalorder %s74, %s77
    %p86 = scmp.eq.s32.totalorder %s14, 1
    %p87 = por %p85, %p86
    %p88 = scmp.ne.s32.totalorder %s77, %s78
    %p89 = scmp.eq.s32.totalorder %s14, 0
    %p90 = por %p88, %p89
    %p91 = scmp.ne.s32.totalorder %s77, %s78
    %p92 = scmp.eq.s32.totalorder %s15, 1
    %p93 = por %p91, %p92
    %p95 = scmp.ne.s32.totalorder %s78, %s94
    %p96 = scmp.eq.s32.totalorder %s15, 0
    %p97 = por %p95, %p96
    %s98 = ssub.s32 %s16, %s35
    %p99 = scmp.eq.s32.totalorder %s98, 0
    %s101 = sadd.s32 %s100, 1
    %s102 = scalar_select %p99, %s100, %s101
    %p105 = pneg %p99
    %p106 = scmp.eq.s32.totalorder %s9, 1
    %p107 = por %p105, %p106
    %p108 = scmp.ne.s32.totalorder %s100, %s103
    %p109 = scmp.eq.s32.totalorder %s9, 0
    %p110 = por %p108, %p109
    %p111 = scmp.ne.s32.totalorder %s100, %s103
    %p112 = scmp.eq.s32.totalorder %s14, 1
    %p113 = por %p111, %p112
    %p114 = scmp.ne.s32.totalorder %s103, %s104
    %p115 = scmp.eq.s32.totalorder %s14, 0
    %p116 = por %p114, %p115
    %p117 = scmp.ne.s32.totalorder %s103, %s104
    %p118 = scmp.eq.s32.totalorder %s15, 1
    %p119 = por %p117, %p118
    %p121 = scmp.ne.s32.totalorder %s104, %s120
    %p122 = scmp.eq.s32.totalorder %s15, 0
    %p123 = por %p121, %p122
    %s124 = smul.u32 %s16, 2
    %s125 = ssub.s32 1, %s124
    %s126 = smul.u32 %s125, %s18
    %s127 = smul.u32 %s35, 2
    %s128 = ssub.s32 1, %s127
    %s129 = smul.u32 %s128, %s27
    %s130 = ssub.s32 %s16, %s35
    %s131 = ssub.s32 %s126, %s129
    %s132 = sor.u32 %s130, %s131
    %s133 = ssub.s32 %s17, %s31
    %s134 = sor.u32 %s132, %s133
    %p135 = scmp.eq.s32.totalorder %s134, 0
    %s137 = sadd.s32 %s136, 1
    %s138 = scalar_select %p135, %s136, %s137
    %p141 = pneg %p135
    %p142 = scmp.eq.s32.totalorder %s9, 1
    %p143 = por %p141, %p142
    %p144 = scmp.ne.s32.totalorder %s136, %s139
    %p145 = scmp.eq.s32.totalorder %s9, 0
    %p146 = por %p144, %p145
    %p147 = scmp.ne.s32.totalorder %s136, %s139
    %p148 = scmp.eq.s32.totalorder %s14, 1
    %p149 = por %p147, %p148
    %p150 = scmp.ne.s32.totalorder %s139, %s140
    %p151 = scmp.eq.s32.totalorder %s14, 0
    %p152 = por %p150, %p151
    %p153 = scmp.ne.s32.totalorder %s139, %s140
    %p154 = scmp.eq.s32.totalorder %s15, 1
    %p155 = por %p153, %p154
    %p157 = scmp.ne.s32.totalorder %s140, %s156
    %p158 = scmp.eq.s32.totalorder %s15, 0
    %p159 = por %p157, %p158
    %p160 = scmp.le.s32.totalorder 1, %s9
    %p161 = scmp.lt.s32.totalorder %s9, 3
    %p162 = pnand %p160, %p161
    %p163 = pneg %p162
    // Predicated region
    $region9: #{title_encoder_forward.1} parent=5 // pred_check
      _
    $region10: #{title_encoder_forward.1} parent=5 // pred_check_branch
      %165 = sbr.rel (%p162) target = $region12
    $region11: #{title_encoder_forward.1} parent=5 // pred_region
      %s166 = ssub.s32 %s9, 1
    $region12: #{title_encoder_forward.1} parent=5 // pred_fallthru
      _
    %p167 = scmp.lt.s32.totalorder %s9, 2
    // Predicated region
    $region13: #{title_encoder_forward.1} parent=5 // pred_check
      %p168 = pneg %p167
    $region14: #{title_encoder_forward.1} parent=5 // pred_check_branch
      %170 = sbr.rel (%p168) target = $region16
    $region15: #{title_encoder_forward.1} parent=5 // pred_region
      // Predicated region
      $region17: #{title_encoder_forward.1} parent=15 // pred_check
        %p171 = pneg %p58
      $region18: #{title_encoder_forward.1} parent=15 // pred_check_branch
        %173 = sbr.rel (%p171) target = $region20
      $region19: #{title_encoder_forward.1} parent=15 // pred_region
        %s174 = smul.u32 %s16, 2
        %s175 = ssub.s32 1, %s174
        %s176 = smul.u32 %s175, %s18
        %s177 = smul.u32 8, %s176
        %p178 = scmp.lt.s32.totalorder %s16, 1
        %s179 = scalar_select %p178, %s16, 1
        %p180 = scmp.lt.s32.totalorder %s177, 7
        %s181 = scalar_select %p180, %s177, 7
        %p182 = scmp.lt.s32.totalorder %s17, 0
        %s183 = scalar_select %p182, %s17, 0
        %s184 = smul.addr %s183, 3
        %s185 = smul.addr %s181, 3
        %s186 = sadd.s32 %s184, %s185
        %s187 = smul.addr %s179, 24
        %s188 = sadd.s32 %s186, %s187
        %s189 = smul.addr %s188, 4
        %s190 = scalar_lea.vmem %s0, %s189
        %s191 = smul.u32 %s16, 2
        %s192 = ssub.s32 1, %s191
        %s193 = smul.u32 %s192, %s18
        %s194 = smul.u32 8, %s193
      $region20: #{title_encoder_forward.1} parent=15 // pred_fallthru
        _
      // Predicated region
      $region21: #{title_encoder_forward.1} parent=15 // pred_check
        %p195 = pneg %p84
      $region22: #{title_encoder_forward.1} parent=15 // pred_check_branch
        %197 = sbr.rel (%p195) target = $region24
      $region23: #{title_encoder_forward.1} parent=15 // pred_region
        %p198 = scmp.lt.s32.totalorder %s16, 1
        %s199 = scalar_select %p198, %s16, 1
        %s200 = smul.addr %s199, 48
        %s201 = smul.addr %s200, 4
        %s202 = scalar_lea.vmem %s1, %s201
      $region24: #{title_encoder_forward.1} parent=15 // pred_fallthru
        _
      // Predicated region
      $region25: #{title_encoder_forward.1} parent=15 // pred_check
        %p203 = pneg %p110
      $region26: #{title_encoder_forward.1} parent=15 // pred_check_branch
        %205 = sbr.rel (%p203) target = $region28
      $region27: #{title_encoder_forward.1} parent=15 // pred_region
        %p206 = scmp.lt.s32.totalorder %s16, 1
        %s207 = scalar_select %p206, %s16, 1
        %s208 = scalar_lea.vmem %s2, %s207
      $region28: #{title_encoder_forward.1} parent=15 // pred_fallthru
        _
    $region16: #{title_encoder_forward.1} parent=5 // pred_fallthru
      _
    %p209 = scmp.le.s32.totalorder 1, %s9
    %p210 = scmp.lt.s32.totalorder %s9, 3
    %p211 = pnand %p209, %p210
    %p212 = pneg %p211
    // Predicated region
    $region29: #{title_encoder_forward.1} parent=5 // pred_check
      _
    $region30: #{title_encoder_forward.1} parent=5 // pred_check_branch
      %214 = sbr.rel (%p211) target = $region32
    $region31: #{title_encoder_forward.1} parent=5 // pred_region
      %s215 = ssub.s32 %s9, 1
      %s216 = smul.u32 %s19, 2
      %s217 = ssub.s32 1, %s216
      %s218 = smul.u32 %s217, %s21
      %s219 = smul.u32 8, %s218
      %p220 = scmp.lt.s32.totalorder %s19, 1
      %s221 = scalar_select %p220, %s19, 1
      %p222 = scmp.lt.s32.totalorder %s219, 7
      %s223 = scalar_select %p222, %s219, 7
      %p224 = scmp.lt.s32.totalorder %s20, 0
      %s225 = scalar_select %p224, %s20, 0
      %s226 = smul.addr %s225, 3
      %s227 = smul.addr %s223, 3
      %s228 = sadd.s32 %s226, %s227
      %s229 = smul.addr %s221, 24
      %s230 = sadd.s32 %s228, %s229
      %s231 = smul.addr %s230, 4
      %s232 = scalar_lea.vmem %s0, %s231
      %p233 = pneg %p64
      %p234 = pneg %p61
      %p235 = scmp.lt.s32.totalorder %s19, 1
      %s236 = scalar_select %p235, %s19, 1
      %s237 = smul.addr %s236, 48
      %s238 = smul.addr %s237, 4
      %s239 = scalar_lea.vmem %s1, %s238
      %p240 = pneg %p90
      %p241 = pneg %p87
      %p242 = scmp.lt.s32.totalorder %s19, 1
      %s243 = scalar_select %p242, %s19, 1
      %s244 = scalar_lea.vmem %s2, %s243
      %p245 = pneg %p116
      %p246 = pneg %p113
      %p247 = pneg %p152
      %p248 = pneg %p149
      %s249 = smul.u32 %s19, 2
      %s250 = ssub.s32 1, %s249
      %s251 = smul.u32 %s250, %s21
      %s252 = smul.u32 8, %s251
      %p253 = scmp.lt.s32.totalorder %s19, 1
      %s254 = scalar_select %p253, %s19, 1
      %p255 = scmp.lt.s32.totalorder %s252, 7
      %s256 = scalar_select %p255, %s252, 7
      %p257 = scmp.lt.s32.totalorder %s20, 0
      %s258 = scalar_select %p257, %s20, 0
      %s259 = sadd.s32 %s258, %s256
      %s260 = smul.addr %s254, 8
      %s261 = sadd.s32 %s259, %s260
      %s262 = smul.addr %s261, 8
      %s263 = scalar_lea.vmem %s3, %s262
      %s264 = smul.u32 %s19, 2
      %s265 = ssub.s32 1, %s264
      %s266 = smul.u32 %s265, %s21
      %s267 = smul.u32 8, %s266
      %p268 = scmp.lt.s32.totalorder %s19, 1
      %s269 = scalar_select %p268, %s19, 1
      %p270 = scmp.lt.s32.totalorder %s267, 7
      %s271 = scalar_select %p270, %s267, 7
      %p272 = scmp.lt.s32.totalorder %s20, 0
      %s273 = scalar_select %p272, %s20, 0
      %s274 = smul.addr %s273, 3
      %s275 = smul.addr %s271, 3
      %s276 = sadd.s32 %s274, %s275
      %s277 = smul.addr %s269, 24
      %s278 = sadd.s32 %s276, %s277
      %s279 = smul.addr %s278, 4
      %s280 = scalar_lea.vmem %s0, %s279
      %s281 = smul.u32 %s19, 2
      %s282 = ssub.s32 1, %s281
      %s283 = smul.u32 %s282, %s21
      %s284 = smul.u32 8, %s283
      %p285 = scmp.lt.s32.totalorder %s19, 1
      %s286 = scalar_select %p285, %s19, 1
      %s287 = smul.addr %s286, 48
      %s288 = smul.addr %s287, 4
      %s289 = scalar_lea.vmem %s1, %s288
      %p290 = scmp.lt.s32.totalorder %s19, 1
      %s291 = scalar_select %p290, %s19, 1
      %s292 = scalar_lea.vmem %s2, %s291
      %s293 = smul.u32 %s19, 2
      %s294 = ssub.s32 1, %s293
      %s295 = smul.u32 %s294, %s21
      %s296 = smul.u32 8, %s295
      %p297 = scmp.lt.s32.totalorder %s19, 1
      %s298 = scalar_select %p297, %s19, 1
      %p299 = scmp.lt.s32.totalorder %s296, 7
      %s300 = scalar_select %p299, %s296, 7
      %p301 = scmp.lt.s32.totalorder %s20, 0
      %s302 = scalar_select %p301, %s20, 0
      %s303 = sadd.s32 %s302, %s300
      %s304 = smul.addr %s298, 8
      %s305 = sadd.s32 %s303, %s304
      %s306 = smul.addr %s305, 8
      %s307 = scalar_lea.vmem %s3, %s306
      %s308 = smul.u32 %s19, 2
      %s309 = ssub.s32 1, %s308
      %s310 = smul.u32 %s309, %s21
      %s311 = smul.u32 8, %s310
      %p313 = scmp.eq.s32.totalorder %s21, 0
      // Predicated region
      $region33: #{title_encoder_forward.1} parent=31 // pred_check
        %p314 = pneg %p313
      $region34: #{title_encoder_forward.1} parent=31 // pred_check_branch
        %316 = sbr.rel (%p314) target = $region36
      $region35: #{title_encoder_forward.1} parent=31 // pred_region
        %317 = vst [vmem:[#allocation2] sm:$0xff] 0.0
      $region36: #{title_encoder_forward.1} parent=31 // pred_fallthru
        _
      %v318 = vld [vmem:[%s289] sm:$0xff]
      %v319 = vld [vmem:[%s289 + $0x8] sm:$0xf]
      %v320 = vld [vmem:[%s289 + $0xc] sm:$0xff]
      %v321 = vld [vmem:[%s289 + $0x14] sm:$0xf]
      %v322 = vld [vmem:[%s289 + $0x18] sm:$0xff]
      %v323 = vld [vmem:[%s289 + $0x20] sm:$0xf]
      %v324 = vld [vmem:[%s289 + $0x24] sm:$0xff]
      %v325 = vld [vmem:[%s289 + $0x2c] sm:$0xf]
      %v326 = vld [vmem:[%s289 + $0x30] sm:$0xff]
      %v327 = vld [vmem:[%s289 + $0x38] sm:$0xf]
      %v328 = vld [vmem:[%s289 + $0x3c] sm:$0xff]
      %v329 = vld [vmem:[%s289 + $0x44] sm:$0xf]
      %v330 = vld [vmem:[%s289 + $0x48] sm:$0xff]
      %v331 = vld [vmem:[%s289 + $0x50] sm:$0xf]
      %v332 = vld [vmem:[%s289 + $0x54] sm:$0xff]
      %v333 = vld [vmem:[%s289 + $0x5c] sm:$0xf]
      %v334 = vld [vmem:[%s289 + $0x60] sm:$0xff]
      %v335 = vld [vmem:[%s289 + $0x68] sm:$0xf]
      %v336 = vld [vmem:[%s289 + $0x6c] sm:$0xff]
      %v337 = vld [vmem:[%s289 + $0x74] sm:$0xf]
      %v338 = vld [vmem:[%s289 + $0x78] sm:$0xff]
      %v339 = vld [vmem:[%s289 + $0x80] sm:$0xf]
      %v340 = vld [vmem:[%s289 + $0x84] sm:$0xff]
      %v341 = vld [vmem:[%s289 + $0x8c] sm:$0xf]
      %v342 = vld [vmem:[%s289 + $0x90] sm:$0xff]
      %v343 = vld [vmem:[%s289 + $0x98] sm:$0xf]
      %v344 = vld [vmem:[%s289 + $0x9c] sm:$0xff]
      %v345 = vld [vmem:[%s289 + $0xa4] sm:$0xf]
      %v346 = vld [vmem:[%s289 + $0xa8] sm:$0xff]
      %v347 = vld [vmem:[%s289 + $0xb0] sm:$0xf]
      %v348 = vld [vmem:[%s289 + $0xb4] sm:$0xff]
      %v349 = vld [vmem:[%s289 + $0xbc] sm:$0xf]
      %v350 = vld [vmem:[%s292] sm:$0x1]
      %v352 = vlaneseq
      %v353 = vshrl.u32 %v352, 7
      %v354 = vsub.s32 0, %v353
      %v355 = vrot.slane %v350, %v354
      %s357 = smul.u32 %s19, 7
      %s358 = smul.u32 %s19, 2
      %s359 = ssub.s32 1, %s358
      %v360 = vld [vmem:[#allocation2] sm:$0xff]
      %s361 = smul.u32 %s357, 3
      %s362 = smul.addr %s361, 4
      %s363 = scalar_lea.vmem %s280, %s362
      %v364 = vld [vmem:[%s363] sm:$0xff]
      %v365 = vld [vmem:[%s363 + $0x8] sm:$0xf]
      %v366 = vunpack.c.l.bf16 %v364
      %v367 = vunpack.c.h.bf16 %v364
      %v368 = vunpack.c.l.bf16 %v365
      %v369 = vpack.c.bf16 %v360, %v360
      %v402 = vunpack.c.l.b16 %v318
      %v403 = vunpack.c.h.b16 %v318
      %v404 = vunpack.c.l.b16 %v319
      %v405 = vunpack.c.l.b16 %v320
      %v406 = vunpack.c.h.b16 %v320
      %v407 = vunpack.c.l.b16 %v321
      %v408 = vunpack.c.l.b16 %v322
      %v409 = vunpack.c.h.b16 %v322
      %v410 = vunpack.c.l.b16 %v323
      %v411 = vunpack.c.l.b16 %v324
      %v412 = vunpack.c.h.b16 %v324
      %v413 = vunpack.c.l.b16 %v325
      %v414 = vunpack.c.l.b16 %v326
      %v415 = vunpack.c.h.b16 %v326
      %v416 = vunpack.c.l.b16 %v327
      %v417 = vunpack.c.l.b16 %v328
      %v418 = vunpack.c.h.b16 %v328
      %v419 = vunpack.c.l.b16 %v329
      %v420 = vunpack.c.l.b16 %v330
      %v421 = vunpack.c.h.b16 %v330
      %v422 = vunpack.c.l.b16 %v331
      %v423 = vunpack.c.l.b16 %v332
      %v424 = vunpack.c.h.b16 %v332
      %v425 = vunpack.c.l.b16 %v333
      %v426 = vunpack.c.l.b16 %v334
      %v427 = vunpack.c.h.b16 %v334
      %v428 = vunpack.c.l.b16 %v335
      %v429 = vunpack.c.l.b16 %v336
      %v430 = vunpack.c.h.b16 %v336
      %v431 = vunpack.c.l.b16 %v337
      %v432 = vunpack.c.l.b16 %v338
      %v433 = vunpack.c.h.b16 %v338
      %v434 = vunpack.c.l.b16 %v339
      %v435 = vunpack.c.l.b16 %v340
      %v436 = vunpack.c.h.b16 %v340
      %v437 = vunpack.c.l.b16 %v341
      %v438 = vunpack.c.l.b16 %v342
      %v439 = vunpack.c.h.b16 %v342
      %v440 = vunpack.c.l.b16 %v343
      %v441 = vunpack.c.l.b16 %v344
      %v442 = vunpack.c.h.b16 %v344
      %v443 = vunpack.c.l.b16 %v345
      %v444 = vunpack.c.l.b16 %v346
      %v445 = vunpack.c.h.b16 %v346
      %v446 = vunpack.c.l.b16 %v347
      %v447 = vunpack.c.l.b16 %v348
      %v448 = vunpack.c.h.b16 %v348
      %v449 = vunpack.c.l.b16 %v349
      %v450 = vpack.c.b16 %v405, %v402
      %v451 = vpack.c.b16 %v406, %v403
      %v452 = vpack.c.b16 %v407, %v404
      %v453 = vpack.c.b16 %v411, %v408
      %v454 = vpack.c.b16 %v412, %v409
      %v455 = vpack.c.b16 %v413, %v410
      %v456 = vpack.c.b16 %v417, %v414
      %v457 = vpack.c.b16 %v418, %v415
      %v458 = vpack.c.b16 %v419, %v416
      %v459 = vpack.c.b16 %v423, %v420
      %v460 = vpack.c.b16 %v424, %v421
      %v461 = vpack.c.b16 %v425, %v422
      %v462 = vpack.c.b16 %v429, %v426
      %v463 = vpack.c.b16 %v430, %v427
      %v464 = vpack.c.b16 %v431, %v428
      %v465 = vpack.c.b16 %v435, %v432
      %v466 = vpack.c.b16 %v436, %v433
      %v467 = vpack.c.b16 %v437, %v434
      %v468 = vpack.c.b16 %v441, %v438
      %v469 = vpack.c.b16 %v442, %v439
      %v470 = vpack.c.b16 %v443, %v440
      %v471 = vpack.c.b16 %v447, %v444
      %v472 = vpack.c.b16 %v448, %v445
      %v473 = vpack.c.b16 %v449, %v446
      %498 = vmatprep.subr.bf16.mxu0 %v472
      %499 = vmatpush1.bf16.msra.mxu0 %v471
      %500 = vmatprep.subr.bf16.mxu0 %v469
      %501 = vmatpush1.bf16.msra.mxu0 %v468
      %502 = vmatprep.subr.bf16.mxu0 %v466
      %503 = vmatpush1.bf16.msra.mxu0 %v465
      %504 = vmatprep.subr.bf16.mxu0 %v463
      %505 = vmatpush1.bf16.msra.mxu0 %v462
      %506 = vmatprep.subr.bf16.mxu0 %v460
      %507 = vmatpush1.bf16.msra.mxu0 %v459
      %508 = vmatprep.subr.bf16.mxu0 %v457
      %509 = vmatpush1.bf16.msra.mxu0 %v456
      %510 = vmatprep.subr.bf16.mxu0 %v454
      %511 = vmatpush1.bf16.msra.mxu0 %v453
      %512 = vmatprep.subr.bf16.mxu0 %v451
      %513 = vmatpush1.bf16.msra.mxu0 %v450
      %514 = vmatprep.subr.bf16.mxu0 0
      %515 = vmatpush2.bf16.msra.mxu0 0
      %516 = vmatprep.subr.bf16.mxu0 0
      %517 = vmatpush2.bf16.msra.mxu0 0
      %518 = vmatprep.subr.bf16.mxu0 0
      %519 = vmatpush2.bf16.msra.mxu0 0
      %520 = vmatprep.subr.bf16.mxu0 0
      %521 = vmatpush2.bf16.msra.mxu0 0
      %522 = vmatprep.subr.bf16.mxu0 0
      %523 = vmatpush2.bf16.msra.mxu0 0
      %524 = vmatprep.subr.bf16.mxu0 0
      %525 = vmatpush2.bf16.msra.mxu0 0
      %526 = vmatprep.subr.bf16.mxu0 0
      %527 = vmatpush2.bf16.msra.mxu0 0
      %528 = vmatprep.subr.bf16.mxu0 0
      %529 = vmatpush2.bf16.msra.mxu0 0
      %530 = vmatprep.mubr.bf16.mxu0 0
      %531 = vmatmul.mubr.bf16.gmra.mxu0 %v369
      %v532 = vpop.f32.mrf.mxu0
      %v533 = vadd.f32 0.0, %v532
      %v534 = vpop.f32.mrf.mxu0
      %v535 = vadd.f32 0.0, %v534
      %v536 = vpop.f32.mrf.mxu0
      %v537 = vpop.f32.mrf.mxu0
      %538 = vdwg.mxu0
      %539 = vmatprep.subr.bf16.mxu0 0
      %540 = vmatpush1.bf16.msra.mxu0 %v473
      %541 = vmatprep.subr.bf16.mxu0 0
      %542 = vmatpush1.bf16.msra.mxu0 %v470
      %543 = vmatprep.subr.bf16.mxu0 0
      %544 = vmatpush1.bf16.msra.mxu0 %v467
      %545 = vmatprep.subr.bf16.mxu0 0
      %546 = vmatpush1.bf16.msra.mxu0 %v464
      %547 = vmatprep.subr.bf16.mxu0 0
      %548 = vmatpush1.bf16.msra.mxu0 %v461
      %549 = vmatprep.subr.bf16.mxu0 0
      %550 = vmatpush1.bf16.msra.mxu0 %v458
      %551 = vmatprep.subr.bf16.mxu0 0
      %552 = vmatpush1.bf16.msra.mxu0 %v455
      %553 = vmatprep.subr.bf16.mxu0 0
      %554 = vmatpush1.bf16.msra.mxu0 %v452
      %555 = vmatprep.subr.bf16.mxu0 0
      %556 = vmatpush2.bf16.msra.mxu0 0
      %557 = vmatprep.subr.bf16.mxu0 0
      %558 = vmatpush2.bf16.msra.mxu0 0
      %559 = vmatprep.subr.bf16.mxu0 0
      %560 = vmatpush2.bf16.msra.mxu0 0
      %561 = vmatprep.subr.bf16.mxu0 0
      %562 = vmatpush2.bf16.msra.mxu0 0
      %563 = vmatprep.subr.bf16.mxu0 0
      %564 = vmatpush2.bf16.msra.mxu0 0
      %565 = vmatprep.subr.bf16.mxu0 0
      %566 = vmatpush2.bf16.msra.mxu0 0
      %567 = vmatprep.subr.bf16.mxu0 0
      %568 = vmatpush2.bf16.msra.mxu0 0
      %569 = vmatprep.subr.bf16.mxu0 0
      %570 = vmatpush2.bf16.msra.mxu0 0
      %571 = vmatprep.mubr.bf16.mxu0 0
      %572 = vmatmul.mubr.bf16.gmra.mxu0 %v369
      %v573 = vpop.f32.mrf.mxu0
      %v574 = vadd.f32 0.0, %v573
      %v575 = vpop.f32.mrf.mxu0
      %v576 = vpop.f32.mrf.mxu0
      %v577 = vpop.f32.mrf.mxu0
      %578 = vdwg.mxu0
      %v579 = vadd.f32 %v366, %v533
      %v580 = vxor.u32 %v579, 2147483648
      %v581 = vmul.f32 %v580, 1.442695
      %v582 = vpow.pop %v581
      %v583 = vadd.f32 %v582, 1.0
      %v584 = vrcp.pop %v583
      %v585 = vmul.f32 1.0, %v584
      %v586 = vadd.f32 %v367, %v535
      %v587 = vxor.u32 %v586, 2147483648
      %v588 = vmul.f32 %v587, 1.442695
      %v589 = vpow.pop %v588
      %v590 = vadd.f32 %v589, 1.0
      %v591 = vrcp.pop %v590
      %v592 = vmul.f32 1.0, %v591
      %v593 = vadd.f32 %v574, %v355
      %v594 = vmul.f32 %v585, %v593
      %v595 = vadd.f32 %v368, %v594
      %v596 = vtanh.pop %v595
      %v597 = vsub.f32 1.0, %v592
      %v598 = vmul.f32 %v597, %v596
      %v599 = vmul.f32 %v592, %v360
      %v600 = vadd.f32 %v598, %v599
      %s601 = smul.u32 %s357, 8
      %s602 = scalar_lea.vmem %s307, %s601
      %603 = vst [vmem:[%s602] sm:$0xff] %v600
      %s604 = sadd.s32 %s357, %s359
      %s605 = smul.u32 %s604, 3
      %s606 = smul.addr %s605, 4
      %s607 = scalar_lea.vmem %s280, %s606
      %v608 = vld [vmem:[%s607] sm:$0xff]
      %v609 = vld [vmem:[%s607 + $0x8] sm:$0xf]
      %v610 = vunpack.c.l.bf16 %v608
      %v611 = vunpack.c.h.bf16 %v608
      %v612 = vunpack.c.l.bf16 %v609
      %v613 = vpack.c.bf16 %v600, %v600
      %614 = vmatprep.subr.bf16.mxu0 %v472
      %615 = vmatpush1.bf16.msra.mxu0 %v471
      %616 = vmatprep.subr.bf16.mxu0 %v469
      %617 = vmatpush1.bf16.msra.mxu0 %v468
      %618 = vmatprep.subr.bf16.mxu0 %v466
      %619 = vmatpush1.bf16.msra.mxu0 %v465
      %620 = vmatprep.subr.bf16.mxu0 %v463
      %621 = vmatpush1.bf16.msra.mxu0 %v462
      %622 = vmatprep.subr.bf16.mxu0 %v460
      %623 = vmatpush1.bf16.msra.mxu0 %v459
      %624 = vmatprep.subr.bf16.mxu0 %v457
      %625 = vmatpush1.bf16.msra.mxu0 %v456
      %626 = vmatprep.subr.bf16.mxu0 %v454
      %627 = vmatpush1.bf16.msra.mxu0 %v453
      %628 = vmatprep.subr.bf16.mxu0 %v451
      %629 = vmatpush1.bf16.msra.mxu0 %v450
      %630 = vmatprep.subr.bf16.mxu0 0
      %631 = vmatpush2.bf16.msra.mxu0 0
      %632 = vmatprep.subr.bf16.mxu0 0
      %633 = vmatpush2.bf16.msra.mxu0 0
      %634 = vmatprep.subr.bf16.mxu0 0
      %635 = vmatpush2.bf16.msra.mxu0 0
      %636 = vmatprep.subr.bf16.mxu0 0
      %637 = vmatpush2.bf16.msra.mxu0 0
      %638 = vmatprep.subr.bf16.mxu0 0
      %639 = vmatpush2.bf16.msra.mxu0 0
      %640 = vmatprep.subr.bf16.mxu0 0
      %641 = vmatpush2.bf16.msra.mxu0 0
      %642 = vmatprep.subr.bf16.mxu0 0
      %643 = vmatpush2.bf16.msra.mxu0 0
      %644 = vmatprep.subr.bf16.mxu0 0
      %645 = vmatpush2.bf16.msra.mxu0 0
      %646 = vmatprep.mubr.bf16.mxu0 0
      %647 = vmatmul.mubr.bf16.gmra.mxu0 %v613
      %v648 = vpop.f32.mrf.mxu0
      %v649 = vadd.f32 0.0, %v648
      %v650 = vpop.f32.mrf.mxu0
      %v651 = vadd.f32 0.0, %v650
      %v652 = vpop.f32.mrf.mxu0
      %v653 = vpop.f32.mrf.mxu0
      %654 = vdwg.mxu0
      %655 = vmatprep.subr.bf16.mxu0 0
      %656 = vmatpush1.bf16.msra.mxu0 %v473
      %657 = vmatprep.subr.bf16.mxu0 0
      %658 = vmatpush1.bf16.msra.mxu0 %v470
      %659 = vmatprep.subr.bf16.mxu0 0
      %660 = vmatpush1.bf16.msra.mxu0 %v467
      %661 = vmatprep.subr.bf16.mxu0 0
      %662 = vmatpush1.bf16.msra.mxu0 %v464
      %663 = vmatprep.subr.bf16.mxu0 0
      %664 = vmatpush1.bf16.msra.mxu0 %v461
      %665 = vmatprep.subr.bf16.mxu0 0
      %666 = vmatpush1.bf16.msra.mxu0 %v458
      %667 = vmatprep.subr.bf16.mxu0 0
      %668 = vmatpush1.bf16.msra.mxu0 %v455
      %669 = vmatprep.subr.bf16.mxu0 0
      %670 = vmatpush1.bf16.msra.mxu0 %v452
      %671 = vmatprep.subr.bf16.mxu0 0
      %672 = vmatpush2.bf16.msra.mxu0 0
      %673 = vmatprep.subr.bf16.mxu0 0
      %674 = vmatpush2.bf16.msra.mxu0 0
      %675 = vmatprep.subr.bf16.mxu0 0
      %676 = vmatpush2.bf16.msra.mxu0 0
      %677 = vmatprep.subr.bf16.mxu0 0
      %678 = vmatpush2.bf16.msra.mxu0 0
      %679 = vmatprep.subr.bf16.mxu0 0
      %680 = vmatpush2.bf16.msra.mxu0 0
      %681 = vmatprep.subr.bf16.mxu0 0
      %682 = vmatpush2.bf16.msra.mxu0 0
      %683 = vmatprep.subr.bf16.mxu0 0
      %684 = vmatpush2.bf16.msra.mxu0 0
      %685 = vmatprep.subr.bf16.mxu0 0
      %686 = vmatpush2.bf16.msra.mxu0 0
      %687 = vmatprep.mubr.bf16.mxu0 0
      %688 = vmatmul.mubr.bf16.gmra.mxu0 %v613
      %v689 = vpop.f32.mrf.mxu0
      %v690 = vadd.f32 0.0, %v689
      %v691 = vpop.f32.mrf.mxu0
      %v692 = vpop.f32.mrf.mxu0
      %v693 = vpop.f32.mrf.mxu0
      %694 = vdwg.mxu0
      %v695 = vadd.f32 %v610, %v649
      %v696 = vxor.u32 %v695, 2147483648
      %v697 = vmul.f32 %v696, 1.442695
      %v698 = vpow.pop %v697
      %v699 = vadd.f32 %v698, 1.0
      %v700 = vrcp.pop %v699
      %v701 = vmul.f32 1.0, %v700
      %v702 = vadd.f32 %v611, %v651
      %v703 = vxor.u32 %v702, 2147483648
      %v704 = vmul.f32 %v703, 1.442695
      %v705 = vpow.pop %v704
      %v706 = vadd.f32 %v705, 1.0
      %v707 = vrcp.pop %v706
      %v708 = vmul.f32 1.0, %v707
      %v709 = vadd.f32 %v690, %v355
      %v710 = vmul.f32 %v701, %v709
      %v711 = vadd.f32 %v612, %v710
      %v712 = vtanh.pop %v711
      %v713 = vsub.f32 1.0, %v708
      %v714 = vmul.f32 %v713, %v712
      %v715 = vmul.f32 %v708, %v600
      %v716 = vadd.f32 %v714, %v715
      %s717 = smul.u32 %s604, 8
      %s718 = scalar_lea.vmem %s307, %s717
      %719 = vst [vmem:[%s718] sm:$0xff] %v716
      %s720 = smul.u32 %s359, 2
      %s721 = sadd.s32 %s357, %s720
      %s722 = smul.u32 %s721, 3
      %s723 = smul.addr %s722, 4
      %s724 = scalar_lea.vmem %s280, %s723
      %v725 = vld [vmem:[%s724] sm:$0xff]
      %v726 = vld [vmem:[%s724 + $0x8] sm:$0xf]
      %v727 = vunpack.c.l.bf16 %v725
      %v728 = vunpack.c.h.bf16 %v725
      %v729 = vunpack.c.l.bf16 %v726
      %v730 = vpack.c.bf16 %v716, %v716
      %731 = vmatprep.subr.bf16.mxu0 %v472
      %732 = vmatpush1.bf16.msra.mxu0 %v471
      %733 = vmatprep.subr.bf16.mxu0 %v469
      %734 = vmatpush1.bf16.msra.mxu0 %v468
      %735 = vmatprep.subr.bf16.mxu0 %v466
      %736 = vmatpush1.bf16.msra.mxu0 %v465
      %737 = vmatprep.subr.bf16.mxu0 %v463
      %738 = vmatpush1.bf16.msra.mxu0 %v462
      %739 = vmatprep.subr.bf16.mxu0 %v460
      %740 = vmatpush1.bf16.msra.mxu0 %v459
      %741 = vmatprep.subr.bf16.mxu0 %v457
      %742 = vmatpush1.bf16.msra.mxu0 %v456
      %743 = vmatprep.subr.bf16.mxu0 %v454
      %744 = vmatpush1.bf16.msra.mxu0 %v453
      %745 = vmatprep.subr.bf16.mxu0 %v451
      %746 = vmatpush1.bf16.msra.mxu0 %v450
      %747 = vmatprep.subr.bf16.mxu0 0
      %748 = vmatpush2.bf16.msra.mxu0 0
      %749 = vmatprep.subr.bf16.mxu0 0
      %750 = vmatpush2.bf16.msra.mxu0 0
      %751 = vmatprep.subr.bf16.mxu0 0
      %752 = vmatpush2.bf16.msra.mxu0 0
      %753 = vmatprep.subr.bf16.mxu0 0
      %754 = vmatpush2.bf16.msra.mxu0 0
      %755 = vmatprep.subr.bf16.mxu0 0
      %756 = vmatpush2.bf16.msra.mxu0 0
      %757 = vmatprep.subr.bf16.mxu0 0
      %758 = vmatpush2.bf16.msra.mxu0 0
      %759 = vmatprep.subr.bf16.mxu0 0
      %760 = vmatpush2.bf16.msra.mxu0 0
      %761 = vmatprep.subr.bf16.mxu0 0
      %762 = vmatpush2.bf16.msra.mxu0 0
      %763 = vmatprep.mubr.bf16.mxu0 0
      %764 = vmatmul.mubr.bf16.gmra.mxu0 %v730
      %v765 = vpop.f32.mrf.mxu0
      %v766 = vadd.f32 0.0, %v765
      %v767 = vpop.f32.mrf.mxu0
      %v768 = vadd.f32 0.0, %v767
      %v769 = vpop.f32.mrf.mxu0
      %v770 = vpop.f32.mrf.mxu0
      %771 = vdwg.mxu0
      %772 = vmatprep.subr.bf16.mxu0 0
      %773 = vmatpush1.bf16.msra.mxu0 %v473
      %774 = vmatprep.subr.bf16.mxu0 0
      %775 = vmatpush1.bf16.msra.mxu0 %v470
      %776 = vmatprep.subr.bf16.mxu0 0
      %777 = vmatpush1.bf16.msra.mxu0 %v467
      %778 = vmatprep.subr.bf16.mxu0 0
      %779 = vmatpush1.bf16.msra.mxu0 %v464
      %780 = vmatprep.subr.bf16.mxu0 0
      %781 = vmatpush1.bf16.msra.mxu0 %v461
      %782 = vmatprep.subr.bf16.mxu0 0
      %783 = vmatpush1.bf16.msra.mxu0 %v458
      %784 = vmatprep.subr.bf16.mxu0 0
      %785 = vmatpush1.bf16.msra.mxu0 %v455
      %786 = vmatprep.subr.bf16.mxu0 0
      %787 = vmatpush1.bf16.msra.mxu0 %v452
      %788 = vmatprep.subr.bf16.mxu0 0
      %789 = vmatpush2.bf16.msra.mxu0 0
      %790 = vmatprep.subr.bf16.mxu0 0
      %791 = vmatpush2.bf16.msra.mxu0 0
      %792 = vmatprep.subr.bf16.mxu0 0
      %793 = vmatpush2.bf16.msra.mxu0 0
      %794 = vmatprep.subr.bf16.mxu0 0
      %795 = vmatpush2.bf16.msra.mxu0 0
      %796 = vmatprep.subr.bf16.mxu0 0
      %797 = vmatpush2.bf16.msra.mxu0 0
      %798 = vmatprep.subr.bf16.mxu0 0
      %799 = vmatpush2.bf16.msra.mxu0 0
      %800 = vmatprep.subr.bf16.mxu0 0
      %801 = vmatpush2.bf16.msra.mxu0 0
      %802 = vmatprep.subr.bf16.mxu0 0
      %803 = vmatpush2.bf16.msra.mxu0 0
      %804 = vmatprep.mubr.bf16.mxu0 0
      %805 = vmatmul.mubr.bf16.gmra.mxu0 %v730
      %v806 = vpop.f32.mrf.mxu0
      %v807 = vadd.f32 0.0, %v806
      %v808 = vpop.f32.mrf.mxu0
      %v809 = vpop.f32.mrf.mxu0
      %v810 = vpop.f32.mrf.mxu0
      %811 = vdwg.mxu0
      %v812 = vadd.f32 %v727, %v766
      %v813 = vxor.u32 %v812, 2147483648
      %v814 = vmul.f32 %v813, 1.442695
      %v815 = vpow.pop %v814
      %v816 = vadd.f32 %v815, 1.0
      %v817 = vrcp.pop %v816
      %v818 = vmul.f32 1.0, %v817
      %v819 = vadd.f32 %v728, %v768
      %v820 = vxor.u32 %v819, 2147483648
      %v821 = vmul.f32 %v820, 1.442695
      %v822 = vpow.pop %v821
      %v823 = vadd.f32 %v822, 1.0
      %v824 = vrcp.pop %v823
      %v825 = vmul.f32 1.0, %v824
      %v826 = vadd.f32 %v807, %v355
      %v827 = vmul.f32 %v818, %v826
      %v828 = vadd.f32 %v729, %v827
      %v829 = vtanh.pop %v828
      %v830 = vsub.f32 1.0, %v825
      %v831 = vmul.f32 %v830, %v829
      %v832 = vmul.f32 %v825, %v716
      %v833 = vadd.f32 %v831, %v832
      %s834 = smul.u32 %s721, 8
      %s835 = scalar_lea.vmem %s307, %s834
      %836 = vst [vmem:[%s835] sm:$0xff] %v833
      %s837 = smul.u32 %s359, 3
      %s838 = sadd.s32 %s357, %s837
      %s839 = smul.u32 %s838, 3
      %s840 = smul.addr %s839, 4
      %s841 = scalar_lea.vmem %s280, %s840
      %v842 = vld [vmem:[%s841] sm:$0xff]
      %v843 = vld [vmem:[%s841 + $0x8] sm:$0xf]
      %v844 = vunpack.c.l.bf16 %v842
      %v845 = vunpack.c.h.bf16 %v842
      %v846 = vunpack.c.l.bf16 %v843
      %v847 = vpack.c.bf16 %v833, %v833
      %848 = vmatprep.subr.bf16.mxu0 %v472
      %849 = vmatpush1.bf16.msra.mxu0 %v471
      %850 = vmatprep.subr.bf16.mxu0 %v469
      %851 = vmatpush1.bf16.msra.mxu0 %v468
      %852 = vmatprep.subr.bf16.mxu0 %v466
      %853 = vmatpush1.bf16.msra.mxu0 %v465
      %854 = vmatprep.subr.bf16.mxu0 %v463
      %855 = vmatpush1.bf16.msra.mxu0 %v462
      %856 = vmatprep.subr.bf16.mxu0 %v460
      %857 = vmatpush1.bf16.msra.mxu0 %v459
      %858 = vmatprep.subr.bf16.mxu0 %v457
      %859 = vmatpush1.bf16.msra.mxu0 %v456
      %860 = vmatprep.subr.bf16.mxu0 %v454
      %861 = vmatpush1.bf16.msra.mxu0 %v453
      %862 = vmatprep.subr.bf16.mxu0 %v451
      %863 = vmatpush1.bf16.msra.mxu0 %v450
      %864 = vmatprep.subr.bf16.mxu0 0
      %865 = vmatpush2.bf16.msra.mxu0 0
      %866 = vmatprep.subr.bf16.mxu0 0
      %867 = vmatpush2.bf16.msra.mxu0 0
      %868 = vmatprep.subr.bf16.mxu0 0
      %869 = vmatpush2.bf16.msra.mxu0 0
      %870 = vmatprep.subr.bf16.mxu0 0
      %871 = vmatpush2.bf16.msra.mxu0 0
      %872 = vmatprep.subr.bf16.mxu0 0
      %873 = vmatpush2.bf16.msra.mxu0 0
      %874 = vmatprep.subr.bf16.mxu0 0
      %875 = vmatpush2.bf16.msra.mxu0 0
      %876 = vmatprep.subr.bf16.mxu0 0
      %877 = vmatpush2.bf16.msra.mxu0 0
      %878 = vmatprep.subr.bf16.mxu0 0
      %879 = vmatpush2.bf16.msra.mxu0 0
      %880 = vmatprep.mubr.bf16.mxu0 0
      %881 = vmatmul.mubr.bf16.gmra.mxu0 %v847
      %v882 = vpop.f32.mrf.mxu0
      %v883 = vadd.f32 0.0, %v882
      %v884 = vpop.f32.mrf.mxu0
      %v885 = vadd.f32 0.0, %v884
      %v886 = vpop.f32.mrf.mxu0
      %v887 = vpop.f32.mrf.mxu0
      %888 = vdwg.mxu0
      %889 = vmatprep.subr.bf16.mxu0 0
      %890 = vmatpush1.bf16.msra.mxu0 %v473
      %891 = vmatprep.subr.bf16.mxu0 0
      %892 = vmatpush1.bf16.msra.mxu0 %v470
      %893 = vmatprep.subr.bf16.mxu0 0
      %894 = vmatpush1.bf16.msra.mxu0 %v467
      %895 = vmatprep.subr.bf16.mxu0 0
      %896 = vmatpush1.bf16.msra.mxu0 %v464
      %897 = vmatprep.subr.bf16.mxu0 0
      %898 = vmatpush1.bf16.msra.mxu0 %v461
      %899 = vmatprep.subr.bf16.mxu0 0
      %900 = vmatpush1.bf16.msra.mxu0 %v458
      %901 = vmatprep.subr.bf16.mxu0 0
      %902 = vmatpush1.bf16.msra.mxu0 %v455
      %903 = vmatprep.subr.bf16.mxu0 0
      %904 = vmatpush1.bf16.msra.mxu0 %v452
      %905 = vmatprep.subr.bf16.mxu0 0
      %906 = vmatpush2.bf16.msra.mxu0 0
      %907 = vmatprep.subr.bf16.mxu0 0
      %908 = vmatpush2.bf16.msra.mxu0 0
      %909 = vmatprep.subr.bf16.mxu0 0
      %910 = vmatpush2.bf16.msra.mxu0 0
      %911 = vmatprep.subr.bf16.mxu0 0
      %912 = vmatpush2.bf16.msra.mxu0 0
      %913 = vmatprep.subr.bf16.mxu0 0
      %914 = vmatpush2.bf16.msra.mxu0 0
      %915 = vmatprep.subr.bf16.mxu0 0
      %916 = vmatpush2.bf16.msra.mxu0 0
      %917 = vmatprep.subr.bf16.mxu0 0
      %918 = vmatpush2.bf16.msra.mxu0 0
      %919 = vmatprep.subr.bf16.mxu0 0
      %920 = vmatpush2.bf16.msra.mxu0 0
      %921 = vmatprep.mubr.bf16.mxu0 0
      %922 = vmatmul.mubr.bf16.gmra.mxu0 %v847
      %v923 = vpop.f32.mrf.mxu0
      %v924 = vadd.f32 0.0, %v923
      %v925 = vpop.f32.mrf.mxu0
      %v926 = vpop.f32.mrf.mxu0
      %v927 = vpop.f32.mrf.mxu0
      %928 = vdwg.mxu0
      %v929 = vadd.f32 %v844, %v883
      %v930 = vxor.u32 %v929, 2147483648
      %v931 = vmul.f32 %v930, 1.442695
      %v932 = vpow.pop %v931
      %v933 = vadd.f32 %v932, 1.0
      %v934 = vrcp.pop %v933
      %v935 = vmul.f32 1.0, %v934
      %v936 = vadd.f32 %v845, %v885
      %v937 = vxor.u32 %v936, 2147483648
      %v938 = vmul.f32 %v937, 1.442695
      %v939 = vpow.pop %v938
      %v940 = vadd.f32 %v939, 1.0
      %v941 = vrcp.pop %v940
      %v942 = vmul.f32 1.0, %v941
      %v943 = vadd.f32 %v924, %v355
      %v944 = vmul.f32 %v935, %v943
      %v945 = vadd.f32 %v846, %v944
      %v946 = vtanh.pop %v945
      %v947 = vsub.f32 1.0, %v942
      %v948 = vmul.f32 %v947, %v946
      %v949 = vmul.f32 %v942, %v833
      %v950 = vadd.f32 %v948, %v949
      %s951 = smul.u32 %s838, 8
      %s952 = scalar_lea.vmem %s307, %s951
      %953 = vst [vmem:[%s952] sm:$0xff] %v950
      %s954 = smul.u32 %s359, 4
      %s955 = sadd.s32 %s357, %s954
      %s956 = smul.u32 %s955, 3
      %s957 = smul.addr %s956, 4
      %s958 = scalar_lea.vmem %s280, %s957
      %v959 = vld [vmem:[%s958] sm:$0xff]
      %v960 = vld [vmem:[%s958 + $0x8] sm:$0xf]
      %v961 = vunpack.c.l.bf16 %v959
      %v962 = vunpack.c.h.bf16 %v959
      %v963 = vunpack.c.l.bf16 %v960
      %v964 = vpack.c.bf16 %v950, %v950
      %965 = vmatprep.subr.bf16.mxu0 %v472
      %966 = vmatpush1.bf16.msra.mxu0 %v471
      %967 = vmatprep.subr.bf16.mxu0 %v469
      %968 = vmatpush1.bf16.msra.mxu0 %v468
      %969 = vmatprep.subr.bf16.mxu0 %v466
      %970 = vmatpush1.bf16.msra.mxu0 %v465
      %971 = vmatprep.subr.bf16.mxu0 %v463
      %972 = vmatpush1.bf16.msra.mxu0 %v462
      %973 = vmatprep.subr.bf16.mxu0 %v460
      %974 = vmatpush1.bf16.msra.mxu0 %v459
      %975 = vmatprep.subr.bf16.mxu0 %v457
      %976 = vmatpush1.bf16.msra.mxu0 %v456
      %977 = vmatprep.subr.bf16.mxu0 %v454
      %978 = vmatpush1.bf16.msra.mxu0 %v453
      %979 = vmatprep.subr.bf16.mxu0 %v451
      %980 = vmatpush1.bf16.msra.mxu0 %v450
      %981 = vmatprep.subr.bf16.mxu0 0
      %982 = vmatpush2.bf16.msra.mxu0 0
      %983 = vmatprep.subr.bf16.mxu0 0
      %984 = vmatpush2.bf16.msra.mxu0 0
      %985 = vmatprep.subr.bf16.mxu0 0
      %986 = vmatpush2.bf16.msra.mxu0 0
      %987 = vmatprep.subr.bf16.mxu0 0
      %988 = vmatpush2.bf16.msra.mxu0 0
      %989 = vmatprep.subr.bf16.mxu0 0
      %990 = vmatpush2.bf16.msra.mxu0 0
      %991 = vmatprep.subr.bf16.mxu0 0
      %992 = vmatpush2.bf16.msra.mxu0 0
      %993 = vmatprep.subr.bf16.mxu0 0
      %994 = vmatpush2.bf16.msra.mxu0 0
      %995 = vmatprep.subr.bf16.mxu0 0
      %996 = vmatpush2.bf16.msra.mxu0 0
      %997 = vmatprep.mubr.bf16.mxu0 0
      %998 = vmatmul.mubr.bf16.gmra.mxu0 %v964
      %v999 = vpop.f32.mrf.mxu0
      %v1000 = vadd.f32 0.0, %v999
      %v1001 = vpop.f32.mrf.mxu0
      %v1002 = vadd.f32 0.0, %v1001
      %v1003 = vpop.f32.mrf.mxu0
      %v1004 = vpop.f32.mrf.mxu0
      %1005 = vdwg.mxu0
      %1006 = vmatprep.subr.bf16.mxu0 0
      %1007 = vmatpush1.bf16.msra.mxu0 %v473
      %1008 = vmatprep.subr.bf16.mxu0 0
      %1009 = vmatpush1.bf16.msra.mxu0 %v470
      %1010 = vmatprep.subr.bf16.mxu0 0
      %1011 = vmatpush1.bf16.msra.mxu0 %v467
      %1012 = vmatprep.subr.bf16.mxu0 0
      %1013 = vmatpush1.bf16.msra.mxu0 %v464
      %1014 = vmatprep.subr.bf16.mxu0 0
      %1015 = vmatpush1.bf16.msra.mxu0 %v461
      %1016 = vmatprep.subr.bf16.mxu0 0
      %1017 = vmatpush1.bf16.msra.mxu0 %v458
      %1018 = vmatprep.subr.bf16.mxu0 0
      %1019 = vmatpush1.bf16.msra.mxu0 %v455
      %1020 = vmatprep.subr.bf16.mxu0 0
      %1021 = vmatpush1.bf16.msra.mxu0 %v452
      %1022 = vmatprep.subr.bf16.mxu0 0
      %1023 = vmatpush2.bf16.msra.mxu0 0
      %1024 = vmatprep.subr.bf16.mxu0 0
      %1025 = vmatpush2.bf16.msra.mxu0 0
      %1026 = vmatprep.subr.bf16.mxu0 0
      %1027 = vmatpush2.bf16.msra.mxu0 0
      %1028 = vmatprep.subr.bf16.mxu0 0
      %1029 = vmatpush2.bf16.msra.mxu0 0
      %1030 = vmatprep.subr.bf16.mxu0 0
      %1031 = vmatpush2.bf16.msra.mxu0 0
      %1032 = vmatprep.subr.bf16.mxu0 0
      %1033 = vmatpush2.bf16.msra.mxu0 0
      %1034 = vmatprep.subr.bf16.mxu0 0
      %1035 = vmatpush2.bf16.msra.mxu0 0
      %1036 = vmatprep.subr.bf16.mxu0 0
      %1037 = vmatpush2.bf16.msra.mxu0 0
      %1038 = vmatprep.mubr.bf16.mxu0 0
      %1039 = vmatmul.mubr.bf16.gmra.mxu0 %v964
      %v1040 = vpop.f32.mrf.mxu0
      %v1041 = vadd.f32 0.0, %v1040
      %v1042 = vpop.f32.mrf.mxu0
      %v1043 = vpop.f32.mrf.mxu0
      %v1044 = vpop.f32.mrf.mxu0
      %1045 = vdwg.mxu0
      %v1046 = vadd.f32 %v961, %v1000
      %v1047 = vxor.u32 %v1046, 2147483648
      %v1048 = vmul.f32 %v1047, 1.442695
      %v1049 = vpow.pop %v1048
      %v1050 = vadd.f32 %v1049, 1.0
      %v1051 = vrcp.pop %v1050
      %v1052 = vmul.f32 1.0, %v1051
      %v1053 = vadd.f32 %v962, %v1002
      %v1054 = vxor.u32 %v1053, 2147483648
      %v1055 = vmul.f32 %v1054, 1.442695
      %v1056 = vpow.pop %v1055
      %v1057 = vadd.f32 %v1056, 1.0
      %v1058 = vrcp.pop %v1057
      %v1059 = vmul.f32 1.0, %v1058
      %v1060 = vadd.f32 %v1041, %v355
      %v1061 = vmul.f32 %v1052, %v1060
      %v1062 = vadd.f32 %v963, %v1061
      %v1063 = vtanh.pop %v1062
      %v1064 = vsub.f32 1.0, %v1059
      %v1065 = vmul.f32 %v1064, %v1063
      %v1066 = vmul.f32 %v1059, %v950
      %v1067 = vadd.f32 %v1065, %v1066
      %s1068 = smul.u32 %s955, 8
      %s1069 = scalar_lea.vmem %s307, %s1068
      %1070 = vst [vmem:[%s1069] sm:$0xff] %v1067
      %s1071 = smul.u32 %s359, 5
      %s1072 = sadd.s32 %s357, %s1071
      %s1073 = smul.u32 %s1072, 3
      %s1074 = smul.addr %s1073, 4
      %s1075 = scalar_lea.vmem %s280, %s1074
      %v1076 = vld [vmem:[%s1075] sm:$0xff]
      %v1077 = vld [vmem:[%s1075 + $0x8] sm:$0xf]
      %v1078 = vunpack.c.l.bf16 %v1076
      %v1079 = vunpack.c.h.bf16 %v1076
      %v1080 = vunpack.c.l.bf16 %v1077
      %v1081 = vpack.c.bf16 %v1067, %v1067
      %1082 = vmatprep.subr.bf16.mxu0 %v472
      %1083 = vmatpush1.bf16.msra.mxu0 %v471
      %1084 = vmatprep.subr.bf16.mxu0 %v469
      %1085 = vmatpush1.bf16.msra.mxu0 %v468
      %1086 = vmatprep.subr.bf16.mxu0 %v466
      %1087 = vmatpush1.bf16.msra.mxu0 %v465
      %1088 = vmatprep.subr.bf16.mxu0 %v463
      %1089 = vmatpush1.bf16.msra.mxu0 %v462
      %1090 = vmatprep.subr.bf16.mxu0 %v460
      %1091 = vmatpush1.bf16.msra.mxu0 %v459
      %1092 = vmatprep.subr.bf16.mxu0 %v457
      %1093 = vmatpush1.bf16.msra.mxu0 %v456
      %1094 = vmatprep.subr.bf16.mxu0 %v454
      %1095 = vmatpush1.bf16.msra.mxu0 %v453
      %1096 = vmatprep.subr.bf16.mxu0 %v451
      %1097 = vmatpush1.bf16.msra.mxu0 %v450
      %1098 = vmatprep.subr.bf16.mxu0 0
      %1099 = vmatpush2.bf16.msra.mxu0 0
      %1100 = vmatprep.subr.bf16.mxu0 0
      %1101 = vmatpush2.bf16.msra.mxu0 0
      %1102 = vmatprep.subr.bf16.mxu0 0
      %1103 = vmatpush2.bf16.msra.mxu0 0
      %1104 = vmatprep.subr.bf16.mxu0 0
      %1105 = vmatpush2.bf16.msra.mxu0 0
      %1106 = vmatprep.subr.bf16.mxu0 0
      %1107 = vmatpush2.bf16.msra.mxu0 0
      %1108 = vmatprep.subr.bf16.mxu0 0
      %1109 = vmatpush2.bf16.msra.mxu0 0
      %1110 = vmatprep.subr.bf16.mxu0 0
      %1111 = vmatpush2.bf16.msra.mxu0 0
      %1112 = vmatprep.subr.bf16.mxu0 0
      %1113 = vmatpush2.bf16.msra.mxu0 0
      %1114 = vmatprep.mubr.bf16.mxu0 0
      %1115 = vmatmul.mubr.bf16.gmra.mxu0 %v1081
      %v1116 = vpop.f32.mrf.mxu0
      %v1117 = vadd.f32 0.0, %v1116
      %v1118 = vpop.f32.mrf.mxu0
      %v1119 = vadd.f32 0.0, %v1118
      %v1120 = vpop.f32.mrf.mxu0
      %v1121 = vpop.f32.mrf.mxu0
      %1122 = vdwg.mxu0
      %1123 = vmatprep.subr.bf16.mxu0 0
      %1124 = vmatpush1.bf16.msra.mxu0 %v473
      %1125 = vmatprep.subr.bf16.mxu0 0
      %1126 = vmatpush1.bf16.msra.mxu0 %v470
      %1127 = vmatprep.subr.bf16.mxu0 0
      %1128 = vmatpush1.bf16.msra.mxu0 %v467
      %1129 = vmatprep.subr.bf16.mxu0 0
      %1130 = vmatpush1.bf16.msra.mxu0 %v464
      %1131 = vmatprep.subr.bf16.mxu0 0
      %1132 = vmatpush1.bf16.msra.mxu0 %v461
      %1133 = vmatprep.subr.bf16.mxu0 0
      %1134 = vmatpush1.bf16.msra.mxu0 %v458
      %1135 = vmatprep.subr.bf16.mxu0 0
      %1136 = vmatpush1.bf16.msra.mxu0 %v455
      %1137 = vmatprep.subr.bf16.mxu0 0
      %1138 = vmatpush1.bf16.msra.mxu0 %v452
      %1139 = vmatprep.subr.bf16.mxu0 0
      %1140 = vmatpush2.bf16.msra.mxu0 0
      %1141 = vmatprep.subr.bf16.mxu0 0
      %1142 = vmatpush2.bf16.msra.mxu0 0
      %1143 = vmatprep.subr.bf16.mxu0 0
      %1144 = vmatpush2.bf16.msra.mxu0 0
      %1145 = vmatprep.subr.bf16.mxu0 0
      %1146 = vmatpush2.bf16.msra.mxu0 0
      %1147 = vmatprep.subr.bf16.mxu0 0
      %1148 = vmatpush2.bf16.msra.mxu0 0
      %1149 = vmatprep.subr.bf16.mxu0 0
      %1150 = vmatpush2.bf16.msra.mxu0 0
      %1151 = vmatprep.subr.bf16.mxu0 0
      %1152 = vmatpush2.bf16.msra.mxu0 0
      %1153 = vmatprep.subr.bf16.mxu0 0
      %1154 = vmatpush2.bf16.msra.mxu0 0
      %1155 = vmatprep.mubr.bf16.mxu0 0
      %1156 = vmatmul.mubr.bf16.gmra.mxu0 %v1081
      %v1157 = vpop.f32.mrf.mxu0
      %v1158 = vadd.f32 0.0, %v1157
      %v1159 = vpop.f32.mrf.mxu0
      %v1160 = vpop.f32.mrf.mxu0
      %v1161 = vpop.f32.mrf.mxu0
      %1162 = vdwg.mxu0
      %v1163 = vadd.f32 %v1078, %v1117
      %v1164 = vxor.u32 %v1163, 2147483648
      %v1165 = vmul.f32 %v1164, 1.442695
      %v1166 = vpow.pop %v1165
      %v1167 = vadd.f32 %v1166, 1.0
      %v1168 = vrcp.pop %v1167
      %v1169 = vmul.f32 1.0, %v1168
      %v1170 = vadd.f32 %v1079, %v1119
      %v1171 = vxor.u32 %v1170, 2147483648
      %v1172 = vmul.f32 %v1171, 1.442695
      %v1173 = vpow.pop %v1172
      %v1174 = vadd.f32 %v1173, 1.0
      %v1175 = vrcp.pop %v1174
      %v1176 = vmul.f32 1.0, %v1175
      %v1177 = vadd.f32 %v1158, %v355
      %v1178 = vmul.f32 %v1169, %v1177
      %v1179 = vadd.f32 %v1080, %v1178
      %v1180 = vtanh.pop %v1179
      %v1181 = vsub.f32 1.0, %v1176
      %v1182 = vmul.f32 %v1181, %v1180
      %v1183 = vmul.f32 %v1176, %v1067
      %v1184 = vadd.f32 %v1182, %v1183
      %s1185 = smul.u32 %s1072, 8
      %s1186 = scalar_lea.vmem %s307, %s1185
      %1187 = vst [vmem:[%s1186] sm:$0xff] %v1184
      %s1188 = smul.u32 %s359, 6
      %s1189 = sadd.s32 %s357, %s1188
      %s1190 = smul.u32 %s1189, 3
      %s1191 = smul.addr %s1190, 4
      %s1192 = scalar_lea.vmem %s280, %s1191
      %v1193 = vld [vmem:[%s1192] sm:$0xff]
      %v1194 = vld [vmem:[%s1192 + $0x8] sm:$0xf]
      %v1195 = vunpack.c.l.bf16 %v1193
      %v1196 = vunpack.c.h.bf16 %v1193
      %v1197 = vunpack.c.l.bf16 %v1194
      %v1198 = vpack.c.bf16 %v1184, %v1184
      %1199 = vmatprep.subr.bf16.mxu0 %v472
      %1200 = vmatpush1.bf16.msra.mxu0 %v471
      %1201 = vmatprep.subr.bf16.mxu0 %v469
      %1202 = vmatpush1.bf16.msra.mxu0 %v468
      %1203 = vmatprep.subr.bf16.mxu0 %v466
      %1204 = vmatpush1.bf16.msra.mxu0 %v465
      %1205 = vmatprep.subr.bf16.mxu0 %v463
      %1206 = vmatpush1.bf16.msra.mxu0 %v462
      %1207 = vmatprep.subr.bf16.mxu0 %v460
      %1208 = vmatpush1.bf16.msra.mxu0 %v459
      %1209 = vmatprep.subr.bf16.mxu0 %v457
      %1210 = vmatpush1.bf16.msra.mxu0 %v456
      %1211 = vmatprep.subr.bf16.mxu0 %v454
      %1212 = vmatpush1.bf16.msra.mxu0 %v453
      %1213 = vmatprep.subr.bf16.mxu0 %v451
      %1214 = vmatpush1.bf16.msra.mxu0 %v450
      %1215 = vmatprep.subr.bf16.mxu0 0
      %1216 = vmatpush2.bf16.msra.mxu0 0
      %1217 = vmatprep.subr.bf16.mxu0 0
      %1218 = vmatpush2.bf16.msra.mxu0 0
      %1219 = vmatprep.subr.bf16.mxu0 0
      %1220 = vmatpush2.bf16.msra.mxu0 0
      %1221 = vmatprep.subr.bf16.mxu0 0
      %1222 = vmatpush2.bf16.msra.mxu0 0
      %1223 = vmatprep.subr.bf16.mxu0 0
      %1224 = vmatpush2.bf16.msra.mxu0 0
      %1225 = vmatprep.subr.bf16.mxu0 0
      %1226 = vmatpush2.bf16.msra.mxu0 0
      %1227 = vmatprep.subr.bf16.mxu0 0
      %1228 = vmatpush2.bf16.msra.mxu0 0
      %1229 = vmatprep.subr.bf16.mxu0 0
      %1230 = vmatpush2.bf16.msra.mxu0 0
      %1231 = vmatprep.mubr.bf16.mxu0 0
      %1232 = vmatmul.mubr.bf16.gmra.mxu0 %v1198
      %v1233 = vpop.f32.mrf.mxu0
      %v1234 = vadd.f32 0.0, %v1233
      %v1235 = vpop.f32.mrf.mxu0
      %v1236 = vadd.f32 0.0, %v1235
      %v1237 = vpop.f32.mrf.mxu0
      %v1238 = vpop.f32.mrf.mxu0
      %1239 = vdwg.mxu0
      %1240 = vmatprep.subr.bf16.mxu0 0
      %1241 = vmatpush1.bf16.msra.mxu0 %v473
      %1242 = vmatprep.subr.bf16.mxu0 0
      %1243 = vmatpush1.bf16.msra.mxu0 %v470
      %1244 = vmatprep.subr.bf16.mxu0 0
      %1245 = vmatpush1.bf16.msra.mxu0 %v467
      %1246 = vmatprep.subr.bf16.mxu0 0
      %1247 = vmatpush1.bf16.msra.mxu0 %v464
      %1248 = vmatprep.subr.bf16.mxu0 0
      %1249 = vmatpush1.bf16.msra.mxu0 %v461
      %1250 = vmatprep.subr.bf16.mxu0 0
      %1251 = vmatpush1.bf16.msra.mxu0 %v458
      %1252 = vmatprep.subr.bf16.mxu0 0
      %1253 = vmatpush1.bf16.msra.mxu0 %v455
      %1254 = vmatprep.subr.bf16.mxu0 0
      %1255 = vmatpush1.bf16.msra.mxu0 %v452
      %1256 = vmatprep.subr.bf16.mxu0 0
      %1257 = vmatpush2.bf16.msra.mxu0 0
      %1258 = vmatprep.subr.bf16.mxu0 0
      %1259 = vmatpush2.bf16.msra.mxu0 0
      %1260 = vmatprep.subr.bf16.mxu0 0
      %1261 = vmatpush2.bf16.msra.mxu0 0
      %1262 = vmatprep.subr.bf16.mxu0 0
      %1263 = vmatpush2.bf16.msra.mxu0 0
      %1264 = vmatprep.subr.bf16.mxu0 0
      %1265 = vmatpush2.bf16.msra.mxu0 0
      %1266 = vmatprep.subr.bf16.mxu0 0
      %1267 = vmatpush2.bf16.msra.mxu0 0
      %1268 = vmatprep.subr.bf16.mxu0 0
      %1269 = vmatpush2.bf16.msra.mxu0 0
      %1270 = vmatprep.subr.bf16.mxu0 0
      %1271 = vmatpush2.bf16.msra.mxu0 0
      %1272 = vmatprep.mubr.bf16.mxu0 0
      %1273 = vmatmul.mubr.bf16.gmra.mxu0 %v1198
      %v1274 = vpop.f32.mrf.mxu0
      %v1275 = vadd.f32 0.0, %v1274
      %v1276 = vpop.f32.mrf.mxu0
      %v1277 = vpop.f32.mrf.mxu0
      %v1278 = vpop.f32.mrf.mxu0
      %1279 = vdwg.mxu0
      %v1280 = vadd.f32 %v1195, %v1234
      %v1281 = vxor.u32 %v1280, 2147483648
      %v1282 = vmul.f32 %v1281, 1.442695
      %v1283 = vpow.pop %v1282
      %v1284 = vadd.f32 %v1283, 1.0
      %v1285 = vrcp.pop %v1284
      %v1286 = vmul.f32 1.0, %v1285
      %v1287 = vadd.f32 %v1196, %v1236
      %v1288 = vxor.u32 %v1287, 2147483648
      %v1289 = vmul.f32 %v1288, 1.442695
      %v1290 = vpow.pop %v1289
      %v1291 = vadd.f32 %v1290, 1.0
      %v1292 = vrcp.pop %v1291
      %v1293 = vmul.f32 1.0, %v1292
      %v1294 = vadd.f32 %v1275, %v355
      %v1295 = vmul.f32 %v1286, %v1294
      %v1296 = vadd.f32 %v1197, %v1295
      %v1297 = vtanh.pop %v1296
      %v1298 = vsub.f32 1.0, %v1293
      %v1299 = vmul.f32 %v1298, %v1297
      %v1300 = vmul.f32 %v1293, %v1184
      %v1301 = vadd.f32 %v1299, %v1300
      %s1302 = smul.u32 %s1189, 8
      %s1303 = scalar_lea.vmem %s307, %s1302
      %1304 = vst [vmem:[%s1303] sm:$0xff] %v1301
      %s1305 = smul.u32 %s359, 7
      %s1306 = sadd.s32 %s357, %s1305
      %s1307 = smul.u32 %s1306, 3
      %s1308 = smul.addr %s1307, 4
      %s1309 = scalar_lea.vmem %s280, %s1308
      %v1310 = vld [vmem:[%s1309] sm:$0xff]
      %v1311 = vld [vmem:[%s1309 + $0x8] sm:$0xf]
      %v1312 = vunpack.c.l.bf16 %v1310
      %v1313 = vunpack.c.h.bf16 %v1310
      %v1314 = vunpack.c.l.bf16 %v1311
      %v1315 = vpack.c.bf16 %v1301, %v1301
      %1316 = vmatprep.subr.bf16.mxu0 %v472
      %1317 = vmatpush1.bf16.msra.mxu0 %v471
      %1318 = vmatprep.subr.bf16.mxu0 %v469
      %1319 = vmatpush1.bf16.msra.mxu0 %v468
      %1320 = vmatprep.subr.bf16.mxu0 %v466
      %1321 = vmatpush1.bf16.msra.mxu0 %v465
      %1322 = vmatprep.subr.bf16.mxu0 %v463
      %1323 = vmatpush1.bf16.msra.mxu0 %v462
      %1324 = vmatprep.subr.bf16.mxu0 %v460
      %1325 = vmatpush1.bf16.msra.mxu0 %v459
      %1326 = vmatprep.subr.bf16.mxu0 %v457
      %1327 = vmatpush1.bf16.msra.mxu0 %v456
      %1328 = vmatprep.subr.bf16.mxu0 %v454
      %1329 = vmatpush1.bf16.msra.mxu0 %v453
      %1330 = vmatprep.subr.bf16.mxu0 %v451
      %1331 = vmatpush1.bf16.msra.mxu0 %v450
      %1332 = vmatprep.subr.bf16.mxu0 0
      %1333 = vmatpush2.bf16.msra.mxu0 0
      %1334 = vmatprep.subr.bf16.mxu0 0
      %1335 = vmatpush2.bf16.msra.mxu0 0
      %1336 = vmatprep.subr.bf16.mxu0 0
      %1337 = vmatpush2.bf16.msra.mxu0 0
      %1338 = vmatprep.subr.bf16.mxu0 0
      %1339 = vmatpush2.bf16.msra.mxu0 0
      %1340 = vmatprep.subr.bf16.mxu0 0
      %1341 = vmatpush2.bf16.msra.mxu0 0
      %1342 = vmatprep.subr.bf16.mxu0 0
      %1343 = vmatpush2.bf16.msra.mxu0 0
      %1344 = vmatprep.subr.bf16.mxu0 0
      %1345 = vmatpush2.bf16.msra.mxu0 0
      %1346 = vmatprep.subr.bf16.mxu0 0
      %1347 = vmatpush2.bf16.msra.mxu0 0
      %1348 = vmatprep.mubr.bf16.mxu0 0
      %1349 = vmatmul.mubr.bf16.gmra.mxu0 %v1315
      %v1350 = vpop.f32.mrf.mxu0
      %v1351 = vadd.f32 0.0, %v1350
      %v1352 = vpop.f32.mrf.mxu0
      %v1353 = vadd.f32 0.0, %v1352
      %v1354 = vpop.f32.mrf.mxu0
      %v1355 = vpop.f32.mrf.mxu0
      %1356 = vdwg.mxu0
      %1357 = vmatprep.subr.bf16.mxu0 0
      %1358 = vmatpush1.bf16.msra.mxu0 %v473
      %1359 = vmatprep.subr.bf16.mxu0 0
      %1360 = vmatpush1.bf16.msra.mxu0 %v470
      %1361 = vmatprep.subr.bf16.mxu0 0
      %1362 = vmatpush1.bf16.msra.mxu0 %v467
      %1363 = vmatprep.subr.bf16.mxu0 0
      %1364 = vmatpush1.bf16.msra.mxu0 %v464
      %1365 = vmatprep.subr.bf16.mxu0 0
      %1366 = vmatpush1.bf16.msra.mxu0 %v461
      %1367 = vmatprep.subr.bf16.mxu0 0
      %1368 = vmatpush1.bf16.msra.mxu0 %v458
      %1369 = vmatprep.subr.bf16.mxu0 0
      %1370 = vmatpush1.bf16.msra.mxu0 %v455
      %1371 = vmatprep.subr.bf16.mxu0 0
      %1372 = vmatpush1.bf16.msra.mxu0 %v452
      %1373 = vmatprep.subr.bf16.mxu0 0
      %1374 = vmatpush2.bf16.msra.mxu0 0
      %1375 = vmatprep.subr.bf16.mxu0 0
      %1376 = vmatpush2.bf16.msra.mxu0 0
      %1377 = vmatprep.subr.bf16.mxu0 0
      %1378 = vmatpush2.bf16.msra.mxu0 0
      %1379 = vmatprep.subr.bf16.mxu0 0
      %1380 = vmatpush2.bf16.msra.mxu0 0
      %1381 = vmatprep.subr.bf16.mxu0 0
      %1382 = vmatpush2.bf16.msra.mxu0 0
      %1383 = vmatprep.subr.bf16.mxu0 0
      %1384 = vmatpush2.bf16.msra.mxu0 0
      %1385 = vmatprep.subr.bf16.mxu0 0
      %1386 = vmatpush2.bf16.msra.mxu0 0
      %1387 = vmatprep.subr.bf16.mxu0 0
      %1388 = vmatpush2.bf16.msra.mxu0 0
      %1389 = vmatprep.mubr.bf16.mxu0 0
      %1390 = vmatmul.mubr.bf16.gmra.mxu0 %v1315
      %v1391 = vpop.f32.mrf.mxu0
      %v1392 = vadd.f32 0.0, %v1391
      %v1393 = vpop.f32.mrf.mxu0
      %v1394 = vpop.f32.mrf.mxu0
      %v1395 = vpop.f32.mrf.mxu0
      %1396 = vdwg.mxu0
      %v1397 = vadd.f32 %v1312, %v1351
      %v1398 = vxor.u32 %v1397, 2147483648
      %v1399 = vmul.f32 %v1398, 1.442695
      %v1400 = vpow.pop %v1399
      %v1401 = vadd.f32 %v1400, 1.0
      %v1402 = vrcp.pop %v1401
      %v1403 = vmul.f32 1.0, %v1402
      %v1404 = vadd.f32 %v1313, %v1353
      %v1405 = vxor.u32 %v1404, 2147483648
      %v1406 = vmul.f32 %v1405, 1.442695
      %v1407 = vpow.pop %v1406
      %v1408 = vadd.f32 %v1407, 1.0
      %v1409 = vrcp.pop %v1408
      %v1410 = vmul.f32 1.0, %v1409
      %v1411 = vadd.f32 %v1392, %v355
      %v1412 = vmul.f32 %v1403, %v1411
      %v1413 = vadd.f32 %v1314, %v1412
      %v1414 = vtanh.pop %v1413
      %v1415 = vsub.f32 1.0, %v1410
      %v1416 = vmul.f32 %v1415, %v1414
      %v1417 = vmul.f32 %v1410, %v1301
      %v1418 = vadd.f32 %v1416, %v1417
      %s1419 = smul.u32 %s1306, 8
      %s1420 = scalar_lea.vmem %s307, %s1419
      %1421 = vst [vmem:[%s1420] sm:$0xff] %v1418
      %1422 = vst [vmem:[#allocation2] sm:$0xff] %v1418
      %s1423 = smul.u32 %s19, 2
      %s1424 = ssub.s32 1, %s1423
      %s1425 = smul.u32 %s1424, %s21
      %s1426 = smul.u32 8, %s1425
      %p1427 = scmp.lt.s32.totalorder %s19, 1
      %s1428 = scalar_select %p1427, %s19, 1
      %p1429 = scmp.lt.s32.totalorder %s1426, 7
      %s1430 = scalar_select %p1429, %s1426, 7
      %p1431 = scmp.lt.s32.totalorder %s20, 0
      %s1432 = scalar_select %p1431, %s20, 0
      %s1433 = sadd.s32 %s1432, %s1430
      %s1434 = smul.addr %s1428, 8
      %s1435 = sadd.s32 %s1433, %s1434
      %s1436 = smul.addr %s1435, 8
      %s1437 = scalar_lea.vmem %s3, %s1436
      // Predicated region
      $region37: #{title_encoder_forward.1} parent=31 // pred_check
        %p1438 = pneg %p149
      $region38: #{title_encoder_forward.1} parent=31 // pred_check_branch
        %1440 = sbr.rel (%p1438) target = $region40
      $region39: #{title_encoder_forward.1} parent=31 // pred_region
        %s1441 = smul.u32 %s19, 2
        %s1442 = ssub.s32 1, %s1441
        %s1443 = smul.u32 %s1442, %s21
        %s1444 = smul.u32 8, %s1443
      $region40: #{title_encoder_forward.1} parent=31 // pred_fallthru
        _
    $region32: #{title_encoder_forward.1} parent=5 // pred_fallthru
      _
    %p1445 = scmp.le.s32.totalorder 2, %s9
    // Predicated region
    $region41: #{title_encoder_forward.1} parent=5 // pred_check
      %p1446 = pneg %p1445
    $region42: #{title_encoder_forward.1} parent=5 // pred_check_branch
      %1448 = sbr.rel (%p1446) target = $region44
    $region43: #{title_encoder_forward.1} parent=5 // pred_region
      %s1449 = ssub.s32 %s9, 2
      // Predicated region
      $region45: #{title_encoder_forward.1} parent=43 // pred_check
        %p1450 = pneg %p155
      $region46: #{title_encoder_forward.1} parent=43 // pred_check_branch
        %1452 = sbr.rel (%p1450) target = $region48
      $region47: #{title_encoder_forward.1} parent=43 // pred_region
        %s1453 = smul.u32 %s22, 2
        %s1454 = ssub.s32 1, %s1453
        %s1455 = smul.u32 %s1454, %s24
        %s1456 = smul.u32 8, %s1455
        %p1457 = scmp.lt.s32.totalorder %s22, 1
        %s1458 = scalar_select %p1457, %s22, 1
        %p1459 = scmp.lt.s32.totalorder %s1456, 7
        %s1460 = scalar_select %p1459, %s1456, 7
        %p1461 = scmp.lt.s32.totalorder %s23, 0
        %s1462 = scalar_select %p1461, %s23, 0
        %s1463 = sadd.s32 %s1462, %s1460
        %s1464 = smul.addr %s1458, 8
        %s1465 = sadd.s32 %s1463, %s1464
        %s1466 = smul.addr %s1465, 8
        %s1467 = scalar_lea.vmem %s3, %s1466
      $region48: #{title_encoder_forward.1} parent=43 // pred_fallthru
        _
    $region44: #{title_encoder_forward.1} parent=5 // pred_fallthru
      _
  $region6: #{title_encoder_forward.1} parent=0 // loop_footer
    %s13 = sadd.s32 1, %s9
  $region7: #{title_encoder_forward.1} parent=0 // loop_footer_branch
    %8 = sbr.rel target = $region3
  $region8: #{title_encoder_forward.1} parent=0 // loop_exit
    _

</llo_original>
